<compile_context>
chip_gen: v7x
topology: tpu7x:2x2x1
jax: 0.10.0
libtpu: 0.0.40
codegen_flags: <defaults>
</compile_context>

<pallas_src>
import jax
import jax.numpy as jnp
from jax import lax
from jax.experimental import pallas as pl
from jax.experimental.pallas import tpu as pltpu


def _round_up(x, m):
    return ((x + m - 1) // m) * m


def _lstm_last_hidden_kernel(x_ref, wih_ref, whh_ref, b_ref, out_ref, xw_ref):
    """x_ref: [L*Bp, Hp] bf16 (time-major, batch-padded, lane-padded CLS seq).
    wih_ref/whh_ref: [Hp, 4*Hp] bf16 (gate order i,f,g,o, gate-wise padded).
    b_ref: [1, 4*Hp] f32 (b_ih + b_hh, gate-wise padded).
    out_ref: [Bp, Hp] f32 (last hidden state).
    xw_ref: VMEM scratch [L*Bp, 4*Hp] f32 (hoisted input projection)."""
    Bp, Hp = out_ref.shape
    L = x_ref.shape[0] // Bp

    # Prologue: hoisted input projection for ALL timesteps as one large MXU
    # matmul; bias folded in once (no per-step broadcast).
    xw_ref[...] = (
        jnp.dot(x_ref[...], wih_ref[...], preferred_element_type=jnp.float32)
        + b_ref[...]
    )

    def step(t, carry):
        h, c = carry
        # gates_t = (x_t @ W_ih^T + bias) + h_{t-1} @ W_hh^T   -> [Bp, 4*Hp] f32
        gates = xw_ref[pl.ds(t * Bp, Bp), :] + jnp.dot(
            h.astype(jnp.bfloat16), whh_ref[...],
            preferred_element_type=jnp.float32)

        # PyTorch gate order: input, forget, cell(g), output.
        # Hp is a multiple of 128 -> lane-aligned (free) slices.
        i_g = jax.nn.sigmoid(gates[:, 0 * Hp:1 * Hp])
        f_g = jax.nn.sigmoid(gates[:, 1 * Hp:2 * Hp])
        g_g = jnp.tanh(gates[:, 2 * Hp:3 * Hp])
        o_g = jax.nn.sigmoid(gates[:, 3 * Hp:4 * Hp])

        c_new = f_g * c + i_g * g_g
        h_new = o_g * jnp.tanh(c_new)
        return h_new, c_new

    h0 = jnp.zeros((Bp, Hp), jnp.float32)
    c0 = jnp.zeros((Bp, Hp), jnp.float32)
    h_last, _ = lax.fori_loop(0, L, step, (h0, c0), unroll=True)

    # out = dropout(h_L) — identity at inference.
    # TODO(synk): training-mode dropout (p=0.1) masking not implemented.
    out_ref[...] = h_last.astype(out_ref.dtype)


def _pad_gatewise_weight(w, H, Hp):
    """[H, 4H] (gate blocks i|f|g|o along axis 1) -> [Hp, 4*Hp], zero-padded
    per gate block so in-kernel gate slices at multiples of Hp stay correct."""
    w4 = w.reshape(H, 4, H)
    w4 = jnp.pad(w4, ((0, Hp - H), (0, 0), (0, Hp - H)))
    return w4.reshape(Hp, 4 * Hp)


def _pad_gatewise_bias(b, H, Hp):
    """[1, 4H] -> [1, 4*Hp], zero-padded per gate block."""
    b4 = b.reshape(1, 4, H)
    b4 = jnp.pad(b4, ((0, 0), (0, 0), (0, Hp - H)))
    return b4.reshape(1, 4 * Hp)


def lstm_cls_emb_pallas(x_tbh, w_ih_t, w_hh_t, bias):
    """x_tbh: [L, B, H] time-major CLS sequence; returns [B, H] last hidden."""
    L, B, H = x_tbh.shape
    assert w_ih_t.shape == (H, 4 * H)
    assert w_hh_t.shape == (H, 4 * H)
    assert bias.shape == (1, 4 * H)

    Bp = _round_up(B, 8)      # sublane alignment
    Hp = _round_up(H, 128)    # lane alignment (gate slices / output store)

    # Pad inputs with zeros (exact: padded h/c stay identically zero) and cast
    # matmul operands to bf16 (MXU-native); f32 accumulation kept in-kernel.
    x_p = jnp.pad(x_tbh, ((0, 0), (0, Bp - B), (0, Hp - H)))
    x_p = x_p.reshape(L * Bp, Hp).astype(jnp.bfloat16)
    wih_p = _pad_gatewise_weight(w_ih_t, H, Hp).astype(jnp.bfloat16)
    whh_p = _pad_gatewise_weight(w_hh_t, H, Hp).astype(jnp.bfloat16)
    b_p = _pad_gatewise_bias(bias, H, Hp)   # stays f32

    out_p = pl.pallas_call(
        _lstm_last_hidden_kernel,
        out_shape=jax.ShapeDtypeStruct((Bp, Hp), jnp.float32),
        # Single invocation (no grid): whole arrays resident in VMEM, no
        # redundant double-buffering of the weights.
        in_specs=[
            pl.BlockSpec(memory_space=pltpu.MemorySpace.VMEM),  # x  [L*Bp, Hp]
            pl.BlockSpec(memory_space=pltpu.MemorySpace.VMEM),  # W_ih^T
            pl.BlockSpec(memory_space=pltpu.MemorySpace.VMEM),  # W_hh^T
            pl.BlockSpec(memory_space=pltpu.MemorySpace.VMEM),  # bias
        ],
        out_specs=pl.BlockSpec(memory_space=pltpu.MemorySpace.VMEM),
        scratch_shapes=[
            pltpu.VMEM((L * Bp, 4 * Hp), jnp.float32),  # hoisted xW + bias
        ],
    )(x_p, wih_p, whh_p, b_p)

    return out_p[:B, :H]


def hidden_lstm_cls_emb_forward(hidden_states, params, num_hidden_layers):
    """hidden_states: list of (L+1) arrays [B, S, H] (embeddings + L layers)."""
    # Take the CLS token per layer FIRST, then stack -> avoids materializing
    # the full [L+1, B, S, H] tensor (S x less HBM traffic).
    cls = [hidden_states[i][:, 0, :] for i in range(1, num_hidden_layers + 1)]
    x_tbh = jnp.stack(cls, axis=0)   # [L, B, H] time-major
    return lstm_cls_emb_pallas(
        x_tbh, params["w_ih_t"], params["w_hh_t"], params["bias"]
    )


def init_params(key, hidden_size):
    """Deterministic synthetic LSTM parameters (PyTorch-style uniform init)."""
    H = hidden_size
    k = 1.0 / jnp.sqrt(jnp.float32(H))
    k_ih, k_hh, k_bi, k_bh = jax.random.split(key, 4)
    w_ih = jax.random.uniform(k_ih, (4 * H, H), jnp.float32, -k, k)  # torch layout
    w_hh = jax.random.uniform(k_hh, (4 * H, H), jnp.float32, -k, k)
    b_ih = jax.random.uniform(k_bi, (4 * H,), jnp.float32, -k, k)
    b_hh = jax.random.uniform(k_bh, (4 * H,), jnp.float32, -k, k)
    return {
        "w_ih_t": w_ih.T,                       # [H, 4H], gate order i,f,g,o
        "w_hh_t": w_hh.T,                       # [H, 4H]
        "bias": (b_ih + b_hh).reshape(1, 4 * H),
    }


if __name__ == "__main__":
    # Small config consistent with the module: L transformer layers, H=output_dim.
    num_hidden_layers = 8
    hidden_size = 32     # config.output_dim
    batch = 2
    seq = 8

    key = jax.random.PRNGKey(0)
    k_params, k_data = jax.random.split(key)

    params = init_params(k_params, hidden_size)

    # Synthetic encoder outputs: (L+1) hidden-state tensors of shape [B, S, H].
    hs_keys = jax.random.split(k_data, num_hidden_layers + 1)
    hidden_states = [
        jax.random.normal(hs_keys[i], (batch, seq, hidden_size), jnp.float32)
        for i in range(num_hidden_layers + 1)
    ]

    out = hidden_lstm_cls_emb_forward(hidden_states, params, num_hidden_layers)
    out = jax.block_until_ready(out)
    assert out.shape == (batch, hidden_size)

    # Pure-JAX reference LSTM mirroring the kernel numerics (bf16 matmul
    # operands, f32 accumulation & gate math), no padding.
    def ref_forward():
        cls = [hidden_states[i][:, 0, :] for i in range(1, num_hidden_layers + 1)]
        x = jnp.stack(cls, axis=1)  # [B, L, H]
        H = hidden_size
        wih_bf = params["w_ih_t"].astype(jnp.bfloat16)
        whh_bf = params["w_hh_t"].astype(jnp.bfloat16)
        h = jnp.zeros((batch, H), jnp.float32)
        c = jnp.zeros((batch, H), jnp.float32)
        for t in range(num_hidden_layers):
            g = (jnp.dot(x[:, t, :].astype(jnp.bfloat16), wih_bf,
                         preferred_element_type=jnp.float32)
                 + jnp.dot(h.astype(jnp.bfloat16), whh_bf,
                           preferred_element_type=jnp.float32)
                 + params["bias"])
            i_g = jax.nn.sigmoid(g[:, 0 * H:1 * H])
            f_g = jax.nn.sigmoid(g[:, 1 * H:2 * H])
            g_g = jnp.tanh(g[:, 2 * H:3 * H])
            o_g = jax.nn.sigmoid(g[:, 3 * H:4 * H])
            c = f_g * c + i_g * g_g
            h = o_g * jnp.tanh(c)
        return h

    ref = jax.block_until_ready(ref_forward())
    assert jnp.allclose(out, ref, atol=1e-2, rtol=1e-2), "mismatch vs reference"

    print("KERNEL_OK")
</pallas_src>

<mosaic_0001>
module attributes {stable_mosaic.version = 11 : i64} {
  func.func @_lstm_last_hidden_kernel(%arg0: memref<64x128xbf16, #tpu.memory_space<vmem>>, %arg1: memref<128x512xbf16, #tpu.memory_space<vmem>>, %arg2: memref<128x512xbf16, #tpu.memory_space<vmem>>, %arg3: memref<1x512xf32, #tpu.memory_space<vmem>>, %arg4: memref<8x128xf32, #tpu.memory_space<vmem>>, %arg5: memref<64x512xf32, #tpu.memory_space<vmem>>) attributes {dimension_semantics = [], scalar_prefetch = 0 : i64, scratch_operands = 1 : i64, tpu.core_type = #tpu.core_type<tc>} {
    %c0 = arith.constant 0 : index
    %c0_0 = arith.constant 0 : index
    %0 = vector.load %arg0[%c0, %c0_0] : memref<64x128xbf16, #tpu.memory_space<vmem>>, vector<64x128xbf16>
    %c0_1 = arith.constant 0 : index
    %c0_2 = arith.constant 0 : index
    %1 = vector.load %arg1[%c0_1, %c0_2] : memref<128x512xbf16, #tpu.memory_space<vmem>>, vector<128x512xbf16>
    %cst = arith.constant dense<0.000000e+00> : vector<64x512xf32>
    %2 = tpu.matmul %0, %1, %cst {dimension_numbers = #tpu.dot_dimension_numbers<[1], [0], [0], [1], [0, 0, 1, 1], [], []>} : vector<64x128xbf16>, vector<128x512xbf16>, vector<64x512xf32> -> vector<64x512xf32>
    %c0_3 = arith.constant 0 : index
    %c0_4 = arith.constant 0 : index
    %3 = vector.load %arg3[%c0_3, %c0_4] : memref<1x512xf32, #tpu.memory_space<vmem>>, vector<1x512xf32>
    %4 = vector.broadcast %3 : vector<1x512xf32> to vector<64x512xf32>
    %5 = arith.addf %2, %4 : vector<64x512xf32>
    %c0_5 = arith.constant 0 : index
    %c0_6 = arith.constant 0 : index
    %6 = vector.load %arg5[%c0_5, %c0_6] : memref<64x512xf32, #tpu.memory_space<vmem>>, vector<64x512xf32>
    tpu.vector_store %arg5[%c0_5, %c0_6], %5 {strides = array<i32>} : memref<64x512xf32, #tpu.memory_space<vmem>>, vector<64x512xf32>,
    %cst_7 = arith.constant 0.000000e+00 : f32
    %7 = vector.broadcast %cst_7 : f32 to vector<8x128xf32>
    %cst_8 = arith.constant 0.000000e+00 : f32
    %8 = vector.broadcast %cst_8 : f32 to vector<8x128xf32>
    %c0_i32 = arith.constant 0 : i32
    %c8_i32 = arith.constant 8 : i32
    %9 = arith.muli %c0_i32, %c8_i32 : i32
    %10 = arith.index_cast %9 : i32 to index
    %c0_9 = arith.constant 0 : index
    %11 = vector.load %arg5[%10, %c0_9] : memref<64x512xf32, #tpu.memory_space<vmem>>, vector<8x512xf32>
    %12 = arith.truncf %7 : vector<8x128xf32> to vector<8x128xbf16>
    %c0_10 = arith.constant 0 : index
    %c0_11 = arith.constant 0 : index
    %13 = vector.load %arg2[%c0_10, %c0_11] : memref<128x512xbf16, #tpu.memory_space<vmem>>, vector<128x512xbf16>
    %cst_12 = arith.constant dense<0.000000e+00> : vector<8x512xf32>
    %14 = tpu.matmul %12, %13, %cst_12 {dimension_numbers = #tpu.dot_dimension_numbers<[1], [0], [0], [1], [0, 0, 1, 1], [], []>} : vector<8x128xbf16>, vector<128x512xbf16>, vector<8x512xf32> -> vector<8x512xf32>
    %15 = arith.addf %11, %14 : vector<8x512xf32>
    %16 = vector.extract_strided_slice %15 {offsets = [0, 0], sizes = [8, 128], strides = [1, 1]} : vector<8x512xf32> to vector<8x128xf32>
    %17 = arith.negf %16 : vector<8x128xf32>
    %18 = math.exp %17 : vector<8x128xf32>
    %cst_13 = arith.constant 1.000000e+00 : f32
    %19 = vector.broadcast %cst_13 : f32 to vector<8x128xf32>
    %20 = arith.addf %19, %18 : vector<8x128xf32>
    %21 = arith.divf %19, %20 : vector<8x128xf32>
    %22 = vector.extract_strided_slice %15 {offsets = [0, 128], sizes = [8, 128], strides = [1, 1]} : vector<8x512xf32> to vector<8x128xf32>
    %23 = arith.negf %22 : vector<8x128xf32>
    %24 = math.exp %23 : vector<8x128xf32>
    %cst_14 = arith.constant 1.000000e+00 : f32
    %25 = vector.broadcast %cst_14 : f32 to vector<8x128xf32>
    %26 = arith.addf %25, %24 : vector<8x128xf32>
    %27 = arith.divf %25, %26 : vector<8x128xf32>
    %28 = vector.extract_strided_slice %15 {offsets = [0, 256], sizes = [8, 128], strides = [1, 1]} : vector<8x512xf32> to vector<8x128xf32>
    %29 = math.tanh %28 : vector<8x128xf32>
    %30 = vector.extract_strided_slice %15 {offsets = [0, 384], sizes = [8, 128], strides = [1, 1]} : vector<8x512xf32> to vector<8x128xf32>
    %31 = arith.negf %30 : vector<8x128xf32>
    %32 = math.exp %31 : vector<8x128xf32>
    %cst_15 = arith.constant 1.000000e+00 : f32
    %33 = vector.broadcast %cst_15 : f32 to vector<8x128xf32>
    %34 = arith.addf %33, %32 : vector<8x128xf32>
    %35 = arith.divf %33, %34 : vector<8x128xf32>
    %36 = arith.mulf %27, %8 : vector<8x128xf32>
    %37 = arith.mulf %21, %29 : vector<8x128xf32>
    %38 = arith.addf %36, %37 : vector<8x128xf32>
    %39 = math.tanh %38 : vector<8x128xf32>
    %40 = arith.mulf %35, %39 : vector<8x128xf32>
    %c1_i32 = arith.constant 1 : i32
    %c8_i32_16 = arith.constant 8 : i32
    %41 = arith.muli %c1_i32, %c8_i32_16 : i32
    %42 = arith.index_cast %41 : i32 to index
    %c0_17 = arith.constant 0 : index
    %43 = vector.load %arg5[%42, %c0_17] : memref<64x512xf32, #tpu.memory_space<vmem>>, vector<8x512xf32>
    %44 = arith.truncf %40 : vector<8x128xf32> to vector<8x128xbf16>
    %c0_18 = arith.constant 0 : index
    %c0_19 = arith.constant 0 : index
    %45 = vector.load %arg2[%c0_18, %c0_19] : memref<128x512xbf16, #tpu.memory_space<vmem>>, vector<128x512xbf16>
    %cst_20 = arith.constant dense<0.000000e+00> : vector<8x512xf32>
    %46 = tpu.matmul %44, %45, %cst_20 {dimension_numbers = #tpu.dot_dimension_numbers<[1], [0], [0], [1], [0, 0, 1, 1], [], []>} : vector<8x128xbf16>, vector<128x512xbf16>, vector<8x512xf32> -> vector<8x512xf32>
    %47 = arith.addf %43, %46 : vector<8x512xf32>
    %48 = vector.extract_strided_slice %47 {offsets = [0, 0], sizes = [8, 128], strides = [1, 1]} : vector<8x512xf32> to vector<8x128xf32>
    %49 = arith.negf %48 : vector<8x128xf32>
    %50 = math.exp %49 : vector<8x128xf32>
    %cst_21 = arith.constant 1.000000e+00 : f32
    %51 = vector.broadcast %cst_21 : f32 to vector<8x128xf32>
    %52 = arith.addf %51, %50 : vector<8x128xf32>
    %53 = arith.divf %51, %52 : vector<8x128xf32>
    %54 = vector.extract_strided_slice %47 {offsets = [0, 128], sizes = [8, 128], strides = [1, 1]} : vector<8x512xf32> to vector<8x128xf32>
    %55 = arith.negf %54 : vector<8x128xf32>
    %56 = math.exp %55 : vector<8x128xf32>
    %cst_22 = arith.constant 1.000000e+00 : f32
    %57 = vector.broadcast %cst_22 : f32 to vector<8x128xf32>
    %58 = arith.addf %57, %56 : vector<8x128xf32>
    %59 = arith.divf %57, %58 : vector<8x128xf32>
    %60 = vector.extract_strided_slice %47 {offsets = [0, 256], sizes = [8, 128], strides = [1, 1]} : vector<8x512xf32> to vector<8x128xf32>
    %61 = math.tanh %60 : vector<8x128xf32>
    %62 = vector.extract_strided_slice %47 {offsets = [0, 384], sizes = [8, 128], strides = [1, 1]} : vector<8x512xf32> to vector<8x128xf32>
    %63 = arith.negf %62 : vector<8x128xf32>
    %64 = math.exp %63 : vector<8x128xf32>
    %cst_23 = arith.constant 1.000000e+00 : f32
    %65 = vector.broadcast %cst_23 : f32 to vector<8x128xf32>
    %66 = arith.addf %65, %64 : vector<8x128xf32>
    %67 = arith.divf %65, %66 : vector<8x128xf32>
    %68 = arith.mulf %59, %38 : vector<8x128xf32>
    %69 = arith.mulf %53, %61 : vector<8x128xf32>
    %70 = arith.addf %68, %69 : vector<8x128xf32>
    %71 = math.tanh %70 : vector<8x128xf32>
    %72 = arith.mulf %67, %71 : vector<8x128xf32>
    %c2_i32 = arith.constant 2 : i32
    %c8_i32_24 = arith.constant 8 : i32
    %73 = arith.muli %c2_i32, %c8_i32_24 : i32
    %74 = arith.index_cast %73 : i32 to index
    %c0_25 = arith.constant 0 : index
    %75 = vector.load %arg5[%74, %c0_25] : memref<64x512xf32, #tpu.memory_space<vmem>>, vector<8x512xf32>
    %76 = arith.truncf %72 : vector<8x128xf32> to vector<8x128xbf16>
    %c0_26 = arith.constant 0 : index
    %c0_27 = arith.constant 0 : index
    %77 = vector.load %arg2[%c0_26, %c0_27] : memref<128x512xbf16, #tpu.memory_space<vmem>>, vector<128x512xbf16>
    %cst_28 = arith.constant dense<0.000000e+00> : vector<8x512xf32>
    %78 = tpu.matmul %76, %77, %cst_28 {dimension_numbers = #tpu.dot_dimension_numbers<[1], [0], [0], [1], [0, 0, 1, 1], [], []>} : vector<8x128xbf16>, vector<128x512xbf16>, vector<8x512xf32> -> vector<8x512xf32>
    %79 = arith.addf %75, %78 : vector<8x512xf32>
    %80 = vector.extract_strided_slice %79 {offsets = [0, 0], sizes = [8, 128], strides = [1, 1]} : vector<8x512xf32> to vector<8x128xf32>
    %81 = arith.negf %80 : vector<8x128xf32>
    %82 = math.exp %81 : vector<8x128xf32>
    %cst_29 = arith.constant 1.000000e+00 : f32
    %83 = vector.broadcast %cst_29 : f32 to vector<8x128xf32>
    %84 = arith.addf %83, %82 : vector<8x128xf32>
    %85 = arith.divf %83, %84 : vector<8x128xf32>
    %86 = vector.extract_strided_slice %79 {offsets = [0, 128], sizes = [8, 128], strides = [1, 1]} : vector<8x512xf32> to vector<8x128xf32>
    %87 = arith.negf %86 : vector<8x128xf32>
    %88 = math.exp %87 : vector<8x128xf32>
    %cst_30 = arith.constant 1.000000e+00 : f32
    %89 = vector.broadcast %cst_30 : f32 to vector<8x128xf32>
    %90 = arith.addf %89, %88 : vector<8x128xf32>
    %91 = arith.divf %89, %90 : vector<8x128xf32>
    %92 = vector.extract_strided_slice %79 {offsets = [0, 256], sizes = [8, 128], strides = [1, 1]} : vector<8x512xf32> to vector<8x128xf32>
    %93 = math.tanh %92 : vector<8x128xf32>
    %94 = vector.extract_strided_slice %79 {offsets = [0, 384], sizes = [8, 128], strides = [1, 1]} : vector<8x512xf32> to vector<8x128xf32>
    %95 = arith.negf %94 : vector<8x128xf32>
    %96 = math.exp %95 : vector<8x128xf32>
    %cst_31 = arith.constant 1.000000e+00 : f32
    %97 = vector.broadcast %cst_31 : f32 to vector<8x128xf32>
    %98 = arith.addf %97, %96 : vector<8x128xf32>
    %99 = arith.divf %97, %98 : vector<8x128xf32>
    %100 = arith.mulf %91, %70 : vector<8x128xf32>
    %101 = arith.mulf %85, %93 : vector<8x128xf32>
    %102 = arith.addf %100, %101 : vector<8x128xf32>
    %103 = math.tanh %102 : vector<8x128xf32>
    %104 = arith.mulf %99, %103 : vector<8x128xf32>
    %c3_i32 = arith.constant 3 : i32
    %c8_i32_32 = arith.constant 8 : i32
    %105 = arith.muli %c3_i32, %c8_i32_32 : i32
    %106 = arith.index_cast %105 : i32 to index
    %c0_33 = arith.constant 0 : index
    %107 = vector.load %arg5[%106, %c0_33] : memref<64x512xf32, #tpu.memory_space<vmem>>, vector<8x512xf32>
    %108 = arith.truncf %104 : vector<8x128xf32> to vector<8x128xbf16>
    %c0_34 = arith.constant 0 : index
    %c0_35 = arith.constant 0 : index
    %109 = vector.load %arg2[%c0_34, %c0_35] : memref<128x512xbf16, #tpu.memory_space<vmem>>, vector<128x512xbf16>
    %cst_36 = arith.constant dense<0.000000e+00> : vector<8x512xf32>
    %110 = tpu.matmul %108, %109, %cst_36 {dimension_numbers = #tpu.dot_dimension_numbers<[1], [0], [0], [1], [0, 0, 1, 1], [], []>} : vector<8x128xbf16>, vector<128x512xbf16>, vector<8x512xf32> -> vector<8x512xf32>
    %111 = arith.addf %107, %110 : vector<8x512xf32>
    %112 = vector.extract_strided_slice %111 {offsets = [0, 0], sizes = [8, 128], strides = [1, 1]} : vector<8x512xf32> to vector<8x128xf32>
    %113 = arith.negf %112 : vector<8x128xf32>
    %114 = math.exp %113 : vector<8x128xf32>
    %cst_37 = arith.constant 1.000000e+00 : f32
    %115 = vector.broadcast %cst_37 : f32 to vector<8x128xf32>
    %116 = arith.addf %115, %114 : vector<8x128xf32>
    %117 = arith.divf %115, %116 : vector<8x128xf32>
    %118 = vector.extract_strided_slice %111 {offsets = [0, 128], sizes = [8, 128], strides = [1, 1]} : vector<8x512xf32> to vector<8x128xf32>
    %119 = arith.negf %118 : vector<8x128xf32>
    %120 = math.exp %119 : vector<8x128xf32>
    %cst_38 = arith.constant 1.000000e+00 : f32
    %121 = vector.broadcast %cst_38 : f32 to vector<8x128xf32>
    %122 = arith.addf %121, %120 : vector<8x128xf32>
    %123 = arith.divf %121, %122 : vector<8x128xf32>
    %124 = vector.extract_strided_slice %111 {offsets = [0, 256], sizes = [8, 128], strides = [1, 1]} : vector<8x512xf32> to vector<8x128xf32>
    %125 = math.tanh %124 : vector<8x128xf32>
    %126 = vector.extract_strided_slice %111 {offsets = [0, 384], sizes = [8, 128], strides = [1, 1]} : vector<8x512xf32> to vector<8x128xf32>
    %127 = arith.negf %126 : vector<8x128xf32>
    %128 = math.exp %127 : vector<8x128xf32>
    %cst_39 = arith.constant 1.000000e+00 : f32
    %129 = vector.broadcast %cst_39 : f32 to vector<8x128xf32>
    %130 = arith.addf %129, %128 : vector<8x128xf32>
    %131 = arith.divf %129, %130 : vector<8x128xf32>
    %132 = arith.mulf %123, %102 : vector<8x128xf32>
    %133 = arith.mulf %117, %125 : vector<8x128xf32>
    %134 = arith.addf %132, %133 : vector<8x128xf32>
    %135 = math.tanh %134 : vector<8x128xf32>
    %136 = arith.mulf %131, %135 : vector<8x128xf32>
    %c4_i32 = arith.constant 4 : i32
    %c8_i32_40 = arith.constant 8 : i32
    %137 = arith.muli %c4_i32, %c8_i32_40 : i32
    %138 = arith.index_cast %137 : i32 to index
    %c0_41 = arith.constant 0 : index
    %139 = vector.load %arg5[%138, %c0_41] : memref<64x512xf32, #tpu.memory_space<vmem>>, vector<8x512xf32>
    %140 = arith.truncf %136 : vector<8x128xf32> to vector<8x128xbf16>
    %c0_42 = arith.constant 0 : index
    %c0_43 = arith.constant 0 : index
    %141 = vector.load %arg2[%c0_42, %c0_43] : memref<128x512xbf16, #tpu.memory_space<vmem>>, vector<128x512xbf16>
    %cst_44 = arith.constant dense<0.000000e+00> : vector<8x512xf32>
    %142 = tpu.matmul %140, %141, %cst_44 {dimension_numbers = #tpu.dot_dimension_numbers<[1], [0], [0], [1], [0, 0, 1, 1], [], []>} : vector<8x128xbf16>, vector<128x512xbf16>, vector<8x512xf32> -> vector<8x512xf32>
    %143 = arith.addf %139, %142 : vector<8x512xf32>
    %144 = vector.extract_strided_slice %143 {offsets = [0, 0], sizes = [8, 128], strides = [1, 1]} : vector<8x512xf32> to vector<8x128xf32>
    %145 = arith.negf %144 : vector<8x128xf32>
    %146 = math.exp %145 : vector<8x128xf32>
    %cst_45 = arith.constant 1.000000e+00 : f32
    %147 = vector.broadcast %cst_45 : f32 to vector<8x128xf32>
    %148 = arith.addf %147, %146 : vector<8x128xf32>
    %149 = arith.divf %147, %148 : vector<8x128xf32>
    %150 = vector.extract_strided_slice %143 {offsets = [0, 128], sizes = [8, 128], strides = [1, 1]} : vector<8x512xf32> to vector<8x128xf32>
    %151 = arith.negf %150 : vector<8x128xf32>
    %152 = math.exp %151 : vector<8x128xf32>
    %cst_46 = arith.constant 1.000000e+00 : f32
    %153 = vector.broadcast %cst_46 : f32 to vector<8x128xf32>
    %154 = arith.addf %153, %152 : vector<8x128xf32>
    %155 = arith.divf %153, %154 : vector<8x128xf32>
    %156 = vector.extract_strided_slice %143 {offsets = [0, 256], sizes = [8, 128], strides = [1, 1]} : vector<8x512xf32> to vector<8x128xf32>
    %157 = math.tanh %156 : vector<8x128xf32>
    %158 = vector.extract_strided_slice %143 {offsets = [0, 384], sizes = [8, 128], strides = [1, 1]} : vector<8x512xf32> to vector<8x128xf32>
    %159 = arith.negf %158 : vector<8x128xf32>
    %160 = math.exp %159 : vector<8x128xf32>
    %cst_47 = arith.constant 1.000000e+00 : f32
    %161 = vector.broadcast %cst_47 : f32 to vector<8x128xf32>
    %162 = arith.addf %161, %160 : vector<8x128xf32>
    %163 = arith.divf %161, %162 : vector<8x128xf32>
    %164 = arith.mulf %155, %134 : vector<8x128xf32>
    %165 = arith.mulf %149, %157 : vector<8x128xf32>
    %166 = arith.addf %164, %165 : vector<8x128xf32>
    %167 = math.tanh %166 : vector<8x128xf32>
    %168 = arith.mulf %163, %167 : vector<8x128xf32>
    %c5_i32 = arith.constant 5 : i32
    %c8_i32_48 = arith.constant 8 : i32
    %169 = arith.muli %c5_i32, %c8_i32_48 : i32
    %170 = arith.index_cast %169 : i32 to index
    %c0_49 = arith.constant 0 : index
    %171 = vector.load %arg5[%170, %c0_49] : memref<64x512xf32, #tpu.memory_space<vmem>>, vector<8x512xf32>
    %172 = arith.truncf %168 : vector<8x128xf32> to vector<8x128xbf16>
    %c0_50 = arith.constant 0 : index
    %c0_51 = arith.constant 0 : index
    %173 = vector.load %arg2[%c0_50, %c0_51] : memref<128x512xbf16, #tpu.memory_space<vmem>>, vector<128x512xbf16>
    %cst_52 = arith.constant dense<0.000000e+00> : vector<8x512xf32>
    %174 = tpu.matmul %172, %173, %cst_52 {dimension_numbers = #tpu.dot_dimension_numbers<[1], [0], [0], [1], [0, 0, 1, 1], [], []>} : vector<8x128xbf16>, vector<128x512xbf16>, vector<8x512xf32> -> vector<8x512xf32>
    %175 = arith.addf %171, %174 : vector<8x512xf32>
    %176 = vector.extract_strided_slice %175 {offsets = [0, 0], sizes = [8, 128], strides = [1, 1]} : vector<8x512xf32> to vector<8x128xf32>
    %177 = arith.negf %176 : vector<8x128xf32>
    %178 = math.exp %177 : vector<8x128xf32>
    %cst_53 = arith.constant 1.000000e+00 : f32
    %179 = vector.broadcast %cst_53 : f32 to vector<8x128xf32>
    %180 = arith.addf %179, %178 : vector<8x128xf32>
    %181 = arith.divf %179, %180 : vector<8x128xf32>
    %182 = vector.extract_strided_slice %175 {offsets = [0, 128], sizes = [8, 128], strides = [1, 1]} : vector<8x512xf32> to vector<8x128xf32>
    %183 = arith.negf %182 : vector<8x128xf32>
    %184 = math.exp %183 : vector<8x128xf32>
    %cst_54 = arith.constant 1.000000e+00 : f32
    %185 = vector.broadcast %cst_54 : f32 to vector<8x128xf32>
    %186 = arith.addf %185, %184 : vector<8x128xf32>
    %187 = arith.divf %185, %186 : vector<8x128xf32>
    %188 = vector.extract_strided_slice %175 {offsets = [0, 256], sizes = [8, 128], strides = [1, 1]} : vector<8x512xf32> to vector<8x128xf32>
    %189 = math.tanh %188 : vector<8x128xf32>
    %190 = vector.extract_strided_slice %175 {offsets = [0, 384], sizes = [8, 128], strides = [1, 1]} : vector<8x512xf32> to vector<8x128xf32>
    %191 = arith.negf %190 : vector<8x128xf32>
    %192 = math.exp %191 : vector<8x128xf32>
    %cst_55 = arith.constant 1.000000e+00 : f32
    %193 = vector.broadcast %cst_55 : f32 to vector<8x128xf32>
    %194 = arith.addf %193, %192 : vector<8x128xf32>
    %195 = arith.divf %193, %194 : vector<8x128xf32>
    %196 = arith.mulf %187, %166 : vector<8x128xf32>
    %197 = arith.mulf %181, %189 : vector<8x128xf32>
    %198 = arith.addf %196, %197 : vector<8x128xf32>
    %199 = math.tanh %198 : vector<8x128xf32>
    %200 = arith.mulf %195, %199 : vector<8x128xf32>
    %c6_i32 = arith.constant 6 : i32
    %c8_i32_56 = arith.constant 8 : i32
    %201 = arith.muli %c6_i32, %c8_i32_56 : i32
    %202 = arith.index_cast %201 : i32 to index
    %c0_57 = arith.constant 0 : index
    %203 = vector.load %arg5[%202, %c0_57] : memref<64x512xf32, #tpu.memory_space<vmem>>, vector<8x512xf32>
    %204 = arith.truncf %200 : vector<8x128xf32> to vector<8x128xbf16>
    %c0_58 = arith.constant 0 : index
    %c0_59 = arith.constant 0 : index
    %205 = vector.load %arg2[%c0_58, %c0_59] : memref<128x512xbf16, #tpu.memory_space<vmem>>, vector<128x512xbf16>
    %cst_60 = arith.constant dense<0.000000e+00> : vector<8x512xf32>
    %206 = tpu.matmul %204, %205, %cst_60 {dimension_numbers = #tpu.dot_dimension_numbers<[1], [0], [0], [1], [0, 0, 1, 1], [], []>} : vector<8x128xbf16>, vector<128x512xbf16>, vector<8x512xf32> -> vector<8x512xf32>
    %207 = arith.addf %203, %206 : vector<8x512xf32>
    %208 = vector.extract_strided_slice %207 {offsets = [0, 0], sizes = [8, 128], strides = [1, 1]} : vector<8x512xf32> to vector<8x128xf32>
    %209 = arith.negf %208 : vector<8x128xf32>
    %210 = math.exp %209 : vector<8x128xf32>
    %cst_61 = arith.constant 1.000000e+00 : f32
    %211 = vector.broadcast %cst_61 : f32 to vector<8x128xf32>
    %212 = arith.addf %211, %210 : vector<8x128xf32>
    %213 = arith.divf %211, %212 : vector<8x128xf32>
    %214 = vector.extract_strided_slice %207 {offsets = [0, 128], sizes = [8, 128], strides = [1, 1]} : vector<8x512xf32> to vector<8x128xf32>
    %215 = arith.negf %214 : vector<8x128xf32>
    %216 = math.exp %215 : vector<8x128xf32>
    %cst_62 = arith.constant 1.000000e+00 : f32
    %217 = vector.broadcast %cst_62 : f32 to vector<8x128xf32>
    %218 = arith.addf %217, %216 : vector<8x128xf32>
    %219 = arith.divf %217, %218 : vector<8x128xf32>
    %220 = vector.extract_strided_slice %207 {offsets = [0, 256], sizes = [8, 128], strides = [1, 1]} : vector<8x512xf32> to vector<8x128xf32>
    %221 = math.tanh %220 : vector<8x128xf32>
    %222 = vector.extract_strided_slice %207 {offsets = [0, 384], sizes = [8, 128], strides = [1, 1]} : vector<8x512xf32> to vector<8x128xf32>
    %223 = arith.negf %222 : vector<8x128xf32>
    %224 = math.exp %223 : vector<8x128xf32>
    %cst_63 = arith.constant 1.000000e+00 : f32
    %225 = vector.broadcast %cst_63 : f32 to vector<8x128xf32>
    %226 = arith.addf %225, %224 : vector<8x128xf32>
    %227 = arith.divf %225, %226 : vector<8x128xf32>
    %228 = arith.mulf %219, %198 : vector<8x128xf32>
    %229 = arith.mulf %213, %221 : vector<8x128xf32>
    %230 = arith.addf %228, %229 : vector<8x128xf32>
    %231 = math.tanh %230 : vector<8x128xf32>
    %232 = arith.mulf %227, %231 : vector<8x128xf32>
    %c7_i32 = arith.constant 7 : i32
    %c8_i32_64 = arith.constant 8 : i32
    %233 = arith.muli %c7_i32, %c8_i32_64 : i32
    %234 = arith.index_cast %233 : i32 to index
    %c0_65 = arith.constant 0 : index
    %235 = vector.load %arg5[%234, %c0_65] : memref<64x512xf32, #tpu.memory_space<vmem>>, vector<8x512xf32>
    %236 = arith.truncf %232 : vector<8x128xf32> to vector<8x128xbf16>
    %c0_66 = arith.constant 0 : index
    %c0_67 = arith.constant 0 : index
    %237 = vector.load %arg2[%c0_66, %c0_67] : memref<128x512xbf16, #tpu.memory_space<vmem>>, vector<128x512xbf16>
    %cst_68 = arith.constant dense<0.000000e+00> : vector<8x512xf32>
    %238 = tpu.matmul %236, %237, %cst_68 {dimension_numbers = #tpu.dot_dimension_numbers<[1], [0], [0], [1], [0, 0, 1, 1], [], []>} : vector<8x128xbf16>, vector<128x512xbf16>, vector<8x512xf32> -> vector<8x512xf32>
    %239 = arith.addf %235, %238 : vector<8x512xf32>
    %240 = vector.extract_strided_slice %239 {offsets = [0, 0], sizes = [8, 128], strides = [1, 1]} : vector<8x512xf32> to vector<8x128xf32>
    %241 = arith.negf %240 : vector<8x128xf32>
    %242 = math.exp %241 : vector<8x128xf32>
    %cst_69 = arith.constant 1.000000e+00 : f32
    %243 = vector.broadcast %cst_69 : f32 to vector<8x128xf32>
    %244 = arith.addf %243, %242 : vector<8x128xf32>
    %245 = arith.divf %243, %244 : vector<8x128xf32>
    %246 = vector.extract_strided_slice %239 {offsets = [0, 128], sizes = [8, 128], strides = [1, 1]} : vector<8x512xf32> to vector<8x128xf32>
    %247 = arith.negf %246 : vector<8x128xf32>
    %248 = math.exp %247 : vector<8x128xf32>
    %cst_70 = arith.constant 1.000000e+00 : f32
    %249 = vector.broadcast %cst_70 : f32 to vector<8x128xf32>
    %250 = arith.addf %249, %248 : vector<8x128xf32>
    %251 = arith.divf %249, %250 : vector<8x128xf32>
    %252 = vector.extract_strided_slice %239 {offsets = [0, 256], sizes = [8, 128], strides = [1, 1]} : vector<8x512xf32> to vector<8x128xf32>
    %253 = math.tanh %252 : vector<8x128xf32>
    %254 = vector.extract_strided_slice %239 {offsets = [0, 384], sizes = [8, 128], strides = [1, 1]} : vector<8x512xf32> to vector<8x128xf32>
    %255 = arith.negf %254 : vector<8x128xf32>
    %256 = math.exp %255 : vector<8x128xf32>
    %cst_71 = arith.constant 1.000000e+00 : f32
    %257 = vector.broadcast %cst_71 : f32 to vector<8x128xf32>
    %258 = arith.addf %257, %256 : vector<8x128xf32>
    %259 = arith.divf %257, %258 : vector<8x128xf32>
    %260 = arith.mulf %251, %230 : vector<8x128xf32>
    %261 = arith.mulf %245, %253 : vector<8x128xf32>
    %262 = arith.addf %260, %261 : vector<8x128xf32>
    %263 = math.tanh %262 : vector<8x128xf32>
    %264 = arith.mulf %259, %263 : vector<8x128xf32>
    %c8_i32_72 = arith.constant 8 : i32
    %c0_73 = arith.constant 0 : index
    %c0_74 = arith.constant 0 : index
    %265 = vector.load %arg4[%c0_73, %c0_74] : memref<8x128xf32, #tpu.memory_space<vmem>>, vector<8x128xf32>
    tpu.vector_store %arg4[%c0_73, %c0_74], %264 {strides = array<i32>} : memref<8x128xf32, #tpu.memory_space<vmem>>, vector<8x128xf32>,
    return
  }
}

</mosaic_0001>

<llo_original>
// kernel: tpu_custom_call.1
$region0: #{tpu_custom_call.1}
  #allocation0 [shape = 'u32[]', space=smem, size = 0x4, offset = 0x4, fixed_abs, tag = 'smem constant byte address 0x4 - core index']
  #allocation1 [shape = 'u32[144,128]{1,0:T(1,128)}', space=vmem, size = 0x12000, scoped, tag = 'internal scratch']
  #allocation2 [shape = 'f32[64,512]{1,0:T(8,128)}', space=vmem, size = 0x20000, scoped, tag = 'scratch operand']
  %s0 = inlined_call_operand.hbm [shape: bf16[64,128], index: 0, kind: input, shape index: {}]
  %s1 = inlined_call_operand.hbm [shape: bf16[128,512], index: 1, kind: input, shape index: {}]
  %s2 = inlined_call_operand.hbm [shape: bf16[128,512], index: 2, kind: input, shape index: {}]
  %s3 = inlined_call_operand.vmem [shape: f32[1,512], index: 3, kind: input, shape index: {}]
  %s4 = inlined_call_operand.hbm [shape: f32[8,128], index: 4, kind: output, shape index: {}]
  %s5 = sld [smem:[#allocation0]]
  $region38: #{tpu_custom_call.1} parent=0
    _
  %s7 = ssub.s32 1, %s5
  %s8 = scalar_select 0, %s7, %s5
  $region1: #{tpu_custom_call.1} parent=0
    #allocation3 [shape = 'u8[16384]{0}', space=vmem, size = 0x4000, scoped, tag = 'input window, operand 0, single buffered']
    #allocation4 [shape = 's32[1]{0}', space=sflag, size = 0x4, scoped, tag = 'scoped memory for tpu_custom_call.1']
    #allocation5 [shape = 's32[1]{0}', space=sflag, size = 0x4, scoped, tag = 'scoped memory for tpu_custom_call.1']
    #allocation6 [shape = 'u8[131072]{0}', space=vmem, size = 0x20000, scoped, tag = 'input window, operand 1, single buffered']
    #allocation7 [shape = 's32[1]{0}', space=sflag, size = 0x4, scoped, tag = 'scoped memory for tpu_custom_call.1']
    #allocation8 [shape = 'u8[131072]{0}', space=vmem, size = 0x20000, scoped, tag = 'input window, operand 2, single buffered']
    #allocation9 [shape = 'u8[4096]{0}', space=vmem, size = 0x1000, scoped, tag = 'output window, operand 0, single buffered']
    %9 = vsyncpa [#allocation4], 0
    %10 = vsyncpa [#allocation7], 0
    %11 = vsyncpa [#allocation5], 0
    // Predicated region
    $region2: #{tpu_custom_call.1} parent=1 // pred_check
      _
    $region3: #{tpu_custom_call.1} parent=1 // pred_check_branch
      %13 = sbr.rel (0) target = $region5
    $region4: #{tpu_custom_call.1} parent=1 // pred_region
      %s15 = ssub.s32 512, 512
      %16 = vsyncadd [#allocation4], %s15
      %s17 = sshll.u32 [#allocation3], 4
      %s18 = int_to_ptr.vmem [resolvable:$true] %s17
      %23 = dma.hbm_to_vmem [thread:$0]  %s0, 512, %s18, [#allocation4], 64, 64, 4
    $region5: #{tpu_custom_call.1} parent=1 // pred_fallthru
      _
    // Predicated region
    $region6: #{tpu_custom_call.1} parent=1 // pred_check
      _
    $region7: #{tpu_custom_call.1} parent=1 // pred_check_branch
      %25 = sbr.rel (0) target = $region9
    $region8: #{tpu_custom_call.1} parent=1 // pred_region
      %s27 = ssub.s32 4096, 4096
      %28 = vsyncadd [#allocation7], %s27
      %s29 = sshll.u32 [#allocation6], 4
      %s30 = int_to_ptr.vmem [resolvable:$true] %s29
      %35 = dma.hbm_to_vmem [thread:$0]  %s1, 4096, %s30, [#allocation7], 256, 256, 16
    $region9: #{tpu_custom_call.1} parent=1 // pred_fallthru
      _
    // Predicated region
    $region10: #{tpu_custom_call.1} parent=1 // pred_check
      _
    $region11: #{tpu_custom_call.1} parent=1 // pred_check_branch
      %37 = sbr.rel (0) target = $region13
    $region12: #{tpu_custom_call.1} parent=1 // pred_region
      %s39 = ssub.s32 4096, 4096
      %40 = vsyncadd [#allocation7], %s39
      %s41 = sshll.u32 [#allocation8], 4
      %s42 = int_to_ptr.vmem [resolvable:$true] %s41
      %47 = dma.hbm_to_vmem [thread:$0]  %s2, 4096, %s42, [#allocation7], 256, 256, 16
    $region13: #{tpu_custom_call.1} parent=1 // pred_fallthru
      _
    // Predicated region
    $region14: #{tpu_custom_call.1} parent=1 // pred_check
      _
    $region15: #{tpu_custom_call.1} parent=1 // pred_check_branch
      %49 = sbr.rel (0) target = $region17
    $region16: #{tpu_custom_call.1} parent=1 // pred_region
      _
    $region17: #{tpu_custom_call.1} parent=1 // pred_fallthru
      _
    // Predicated region
    $region18: #{tpu_custom_call.1} parent=1 // pred_check
      _
    $region19: #{tpu_custom_call.1} parent=1 // pred_check_branch
      %51 = sbr.rel (0) target = $region21
    $region20: #{tpu_custom_call.1} parent=1 // pred_region
      %52 = dma.done [#allocation4], 512
    $region21: #{tpu_custom_call.1} parent=1 // pred_fallthru
      _
    // Predicated region
    $region22: #{tpu_custom_call.1} parent=1 // pred_check
      _
    $region23: #{tpu_custom_call.1} parent=1 // pred_check_branch
      %54 = sbr.rel (0) target = $region25
    $region24: #{tpu_custom_call.1} parent=1 // pred_region
      %55 = dma.done [#allocation7], 4096
    $region25: #{tpu_custom_call.1} parent=1 // pred_fallthru
      _
    // Predicated region
    $region26: #{tpu_custom_call.1} parent=1 // pred_check
      _
    $region27: #{tpu_custom_call.1} parent=1 // pred_check_branch
      %57 = sbr.rel (0) target = $region29
    $region28: #{tpu_custom_call.1} parent=1 // pred_region
      %58 = dma.done [#allocation7], 4096
    $region29: #{tpu_custom_call.1} parent=1 // pred_fallthru
      _
    %v60 = vld [vmem:[#allocation3] sm:$0xf]
    %v61 = vld [vmem:[#allocation3 + $0x4] sm:$0xf]
    %v62 = vld [vmem:[#allocation3 + $0x8] sm:$0xf]
    %v63 = vld [vmem:[#allocation3 + $0xc] sm:$0xf]
    %v64 = vld [vmem:[#allocation3 + $0x10] sm:$0xf]
    %v65 = vld [vmem:[#allocation3 + $0x14] sm:$0xf]
    %v66 = vld [vmem:[#allocation3 + $0x18] sm:$0xf]
    %v67 = vld [vmem:[#allocation3 + $0x1c] sm:$0xf]
    %v68 = vld [vmem:[#allocation6] sm:$0xff]
    %v69 = vld [vmem:[#allocation6 + $0x8] sm:$0xff]
    %v70 = vld [vmem:[#allocation6 + $0x10] sm:$0xff]
    %v71 = vld [vmem:[#allocation6 + $0x18] sm:$0xff]
    %v72 = vld [vmem:[#allocation6 + $0x20] sm:$0xff]
    %v73 = vld [vmem:[#allocation6 + $0x28] sm:$0xff]
    %v74 = vld [vmem:[#allocation6 + $0x30] sm:$0xff]
    %v75 = vld [vmem:[#allocation6 + $0x38] sm:$0xff]
    %v76 = vld [vmem:[#allocation6 + $0x40] sm:$0xff]
    %v77 = vld [vmem:[#allocation6 + $0x48] sm:$0xff]
    %v78 = vld [vmem:[#allocation6 + $0x50] sm:$0xff]
    %v79 = vld [vmem:[#allocation6 + $0x58] sm:$0xff]
    %v80 = vld [vmem:[#allocation6 + $0x60] sm:$0xff]
    %v81 = vld [vmem:[#allocation6 + $0x68] sm:$0xff]
    %v82 = vld [vmem:[#allocation6 + $0x70] sm:$0xff]
    %v83 = vld [vmem:[#allocation6 + $0x78] sm:$0xff]
    %v84 = vld [vmem:[#allocation6 + $0x80] sm:$0xff]
    %v85 = vld [vmem:[#allocation6 + $0x88] sm:$0xff]
    %v86 = vld [vmem:[#allocation6 + $0x90] sm:$0xff]
    %v87 = vld [vmem:[#allocation6 + $0x98] sm:$0xff]
    %v88 = vld [vmem:[#allocation6 + $0xa0] sm:$0xff]
    %v89 = vld [vmem:[#allocation6 + $0xa8] sm:$0xff]
    %v90 = vld [vmem:[#allocation6 + $0xb0] sm:$0xff]
    %v91 = vld [vmem:[#allocation6 + $0xb8] sm:$0xff]
    %v92 = vld [vmem:[#allocation6 + $0xc0] sm:$0xff]
    %v93 = vld [vmem:[#allocation6 + $0xc8] sm:$0xff]
    %v94 = vld [vmem:[#allocation6 + $0xd0] sm:$0xff]
    %v95 = vld [vmem:[#allocation6 + $0xd8] sm:$0xff]
    %v96 = vld [vmem:[#allocation6 + $0xe0] sm:$0xff]
    %v97 = vld [vmem:[#allocation6 + $0xe8] sm:$0xff]
    %v98 = vld [vmem:[#allocation6 + $0xf0] sm:$0xff]
    %v99 = vld [vmem:[#allocation6 + $0xf8] sm:$0xff]
    %v100 = vld [vmem:[%s3] sm:$0xf]
    %v102 = vlaneseq
    %v103 = vshrl.u32 %v102, 7
    %v104 = vsub.s32 0, %v103
    %v105 = vrot.slane %v100, %v104
    %v106 = vlaneseq
    %v107 = vshrl.u32 %v106, 7
    %v108 = vsub.s32 1, %v107
    %v109 = vrot.slane %v100, %v108
    %v110 = vlaneseq
    %v111 = vshrl.u32 %v110, 7
    %v112 = vsub.s32 2, %v111
    %v113 = vrot.slane %v100, %v112
    %v114 = vlaneseq
    %v115 = vshrl.u32 %v114, 7
    %v116 = vsub.s32 3, %v115
    %v117 = vrot.slane %v100, %v116
    %v130 = vunpack.c.l.b16 %v60
    %v131 = vunpack.c.l.b16 %v61
    %v132 = vunpack.c.l.b16 %v62
    %v133 = vunpack.c.l.b16 %v63
    %v134 = vunpack.c.l.b16 %v64
    %v135 = vunpack.c.l.b16 %v65
    %v136 = vunpack.c.l.b16 %v66
    %v137 = vunpack.c.l.b16 %v67
    %v138 = vpack.c.b16 %v131, %v130
    %v139 = vpack.c.b16 %v133, %v132
    %v140 = vpack.c.b16 %v135, %v134
    %v141 = vpack.c.b16 %v137, %v136
    %v178 = vunpack.c.l.b16 %v68
    %v179 = vunpack.c.h.b16 %v68
    %v180 = vunpack.c.l.b16 %v69
    %v181 = vunpack.c.h.b16 %v69
    %v182 = vunpack.c.l.b16 %v70
    %v183 = vunpack.c.h.b16 %v70
    %v184 = vunpack.c.l.b16 %v71
    %v185 = vunpack.c.h.b16 %v71
    %v186 = vunpack.c.l.b16 %v72
    %v187 = vunpack.c.h.b16 %v72
    %v188 = vunpack.c.l.b16 %v73
    %v189 = vunpack.c.h.b16 %v73
    %v190 = vunpack.c.l.b16 %v74
    %v191 = vunpack.c.h.b16 %v74
    %v192 = vunpack.c.l.b16 %v75
    %v193 = vunpack.c.h.b16 %v75
    %v194 = vunpack.c.l.b16 %v76
    %v195 = vunpack.c.h.b16 %v76
    %v196 = vunpack.c.l.b16 %v77
    %v197 = vunpack.c.h.b16 %v77
    %v198 = vunpack.c.l.b16 %v78
    %v199 = vunpack.c.h.b16 %v78
    %v200 = vunpack.c.l.b16 %v79
    %v201 = vunpack.c.h.b16 %v79
    %v202 = vunpack.c.l.b16 %v80
    %v203 = vunpack.c.h.b16 %v80
    %v204 = vunpack.c.l.b16 %v81
    %v205 = vunpack.c.h.b16 %v81
    %v206 = vunpack.c.l.b16 %v82
    %v207 = vunpack.c.h.b16 %v82
    %v208 = vunpack.c.l.b16 %v83
    %v209 = vunpack.c.h.b16 %v83
    %v210 = vunpack.c.l.b16 %v84
    %v211 = vunpack.c.h.b16 %v84
    %v212 = vunpack.c.l.b16 %v85
    %v213 = vunpack.c.h.b16 %v85
    %v214 = vunpack.c.l.b16 %v86
    %v215 = vunpack.c.h.b16 %v86
    %v216 = vunpack.c.l.b16 %v87
    %v217 = vunpack.c.h.b16 %v87
    %v218 = vunpack.c.l.b16 %v88
    %v219 = vunpack.c.h.b16 %v88
    %v220 = vunpack.c.l.b16 %v89
    %v221 = vunpack.c.h.b16 %v89
    %v222 = vunpack.c.l.b16 %v90
    %v223 = vunpack.c.h.b16 %v90
    %v224 = vunpack.c.l.b16 %v91
    %v225 = vunpack.c.h.b16 %v91
    %v226 = vunpack.c.l.b16 %v92
    %v227 = vunpack.c.h.b16 %v92
    %v228 = vunpack.c.l.b16 %v93
    %v229 = vunpack.c.h.b16 %v93
    %v230 = vunpack.c.l.b16 %v94
    %v231 = vunpack.c.h.b16 %v94
    %v232 = vunpack.c.l.b16 %v95
    %v233 = vunpack.c.h.b16 %v95
    %v234 = vunpack.c.l.b16 %v96
    %v235 = vunpack.c.h.b16 %v96
    %v236 = vunpack.c.l.b16 %v97
    %v237 = vunpack.c.h.b16 %v97
    %v238 = vunpack.c.l.b16 %v98
    %v239 = vunpack.c.h.b16 %v98
    %v240 = vunpack.c.l.b16 %v99
    %v241 = vunpack.c.h.b16 %v99
    %v242 = vpack.c.b16 %v182, %v178
    %v243 = vpack.c.b16 %v183, %v179
    %v244 = vpack.c.b16 %v184, %v180
    %v245 = vpack.c.b16 %v185, %v181
    %v246 = vpack.c.b16 %v190, %v186
    %v247 = vpack.c.b16 %v191, %v187
    %v248 = vpack.c.b16 %v192, %v188
    %v249 = vpack.c.b16 %v193, %v189
    %v250 = vpack.c.b16 %v198, %v194
    %v251 = vpack.c.b16 %v199, %v195
    %v252 = vpack.c.b16 %v200, %v196
    %v253 = vpack.c.b16 %v201, %v197
    %v254 = vpack.c.b16 %v206, %v202
    %v255 = vpack.c.b16 %v207, %v203
    %v256 = vpack.c.b16 %v208, %v204
    %v257 = vpack.c.b16 %v209, %v205
    %v258 = vpack.c.b16 %v214, %v210
    %v259 = vpack.c.b16 %v215, %v211
    %v260 = vpack.c.b16 %v216, %v212
    %v261 = vpack.c.b16 %v217, %v213
    %v262 = vpack.c.b16 %v222, %v218
    %v263 = vpack.c.b16 %v223, %v219
    %v264 = vpack.c.b16 %v224, %v220
    %v265 = vpack.c.b16 %v225, %v221
    %v266 = vpack.c.b16 %v230, %v226
    %v267 = vpack.c.b16 %v231, %v227
    %v268 = vpack.c.b16 %v232, %v228
    %v269 = vpack.c.b16 %v233, %v229
    %v270 = vpack.c.b16 %v238, %v234
    %v271 = vpack.c.b16 %v239, %v235
    %v272 = vpack.c.b16 %v240, %v236
    %v273 = vpack.c.b16 %v241, %v237
    %306 = vmatprep.subr.bf16.mxu0 %v243
    %307 = vmatpush1.bf16.msra.mxu0 %v242
    %308 = vmatprep.subr.bf16.mxu0 %v247
    %309 = vmatpush1.bf16.msra.mxu0 %v246
    %310 = vmatprep.subr.bf16.mxu0 %v251
    %311 = vmatpush1.bf16.msra.mxu0 %v250
    %312 = vmatprep.subr.bf16.mxu0 %v255
    %313 = vmatpush1.bf16.msra.mxu0 %v254
    %314 = vmatprep.subr.bf16.mxu0 %v259
    %315 = vmatpush1.bf16.msra.mxu0 %v258
    %316 = vmatprep.subr.bf16.mxu0 %v263
    %317 = vmatpush1.bf16.msra.mxu0 %v262
    %318 = vmatprep.subr.bf16.mxu0 %v267
    %319 = vmatpush1.bf16.msra.mxu0 %v266
    %320 = vmatprep.subr.bf16.mxu0 %v271
    %321 = vmatpush1.bf16.msra.mxu0 %v270
    %322 = vmatprep.subr.bf16.mxu0 0
    %323 = vmatpush1.bf16.msra.mxu0 0
    %324 = vmatprep.subr.bf16.mxu0 0
    %325 = vmatpush1.bf16.msra.mxu0 0
    %326 = vmatprep.subr.bf16.mxu0 0
    %327 = vmatpush1.bf16.msra.mxu0 0
    %328 = vmatprep.subr.bf16.mxu0 0
    %329 = vmatpush1.bf16.msra.mxu0 0
    %330 = vmatprep.subr.bf16.mxu0 0
    %331 = vmatpush1.bf16.msra.mxu0 0
    %332 = vmatprep.subr.bf16.mxu0 0
    %333 = vmatpush1.bf16.msra.mxu0 0
    %334 = vmatprep.subr.bf16.mxu0 0
    %335 = vmatpush1.bf16.msra.mxu0 0
    %336 = vmatprep.subr.bf16.mxu0 0
    %337 = vmatpush1.bf16.msra.mxu0 0
    %338 = vmatprep.mubr.bf16.mxu0 0
    %339 = vmatmul.mubr.bf16.gmra.mrb[0].mxu0 %v138
    %v340 = vpop.f32.mrb[0].mxu0
    %v341 = vadd.f32 %v105, %v340
    %v342 = vpop.f32.mrb[0].mxu0
    %v343 = vadd.f32 %v109, %v342
    %v344 = vpop.f32.mrb[0].mxu0
    %v345 = vadd.f32 %v105, %v344
    %v346 = vpop.f32.mrb[0].mxu0
    %v347 = vadd.f32 %v109, %v346
    %348 = vmatprep.mubr.bf16.mxu0 0
    %349 = vmatmul.mubr.bf16.gmra.mrb[0].mxu0 %v139
    %v350 = vpop.f32.mrb[0].mxu0
    %v351 = vadd.f32 %v105, %v350
    %v352 = vpop.f32.mrb[0].mxu0
    %v353 = vadd.f32 %v109, %v352
    %v354 = vpop.f32.mrb[0].mxu0
    %v355 = vadd.f32 %v105, %v354
    %v356 = vpop.f32.mrb[0].mxu0
    %v357 = vadd.f32 %v109, %v356
    %358 = vmatprep.mubr.bf16.mxu0 0
    %359 = vmatmul.mubr.bf16.gmra.mrb[0].mxu0 %v140
    %v360 = vpop.f32.mrb[0].mxu0
    %v361 = vadd.f32 %v105, %v360
    %v362 = vpop.f32.mrb[0].mxu0
    %v363 = vadd.f32 %v109, %v362
    %v364 = vpop.f32.mrb[0].mxu0
    %v365 = vadd.f32 %v105, %v364
    %v366 = vpop.f32.mrb[0].mxu0
    %v367 = vadd.f32 %v109, %v366
    %368 = vmatprep.mubr.bf16.mxu0 0
    %369 = vmatmul.mubr.bf16.gmra.mrb[0].mxu0 %v141
    %v370 = vpop.f32.mrb[0].mxu0
    %v371 = vadd.f32 %v105, %v370
    %v372 = vpop.f32.mrb[0].mxu0
    %v373 = vadd.f32 %v109, %v372
    %v374 = vpop.f32.mrb[0].mxu0
    %v375 = vadd.f32 %v105, %v374
    %v376 = vpop.f32.mrb[0].mxu0
    %v377 = vadd.f32 %v109, %v376
    %378 = vdwg.mxu0
    %379 = vmatprep.subr.bf16.mxu0 %v245
    %380 = vmatpush1.bf16.msra.mxu0 %v244
    %381 = vmatprep.subr.bf16.mxu0 %v249
    %382 = vmatpush1.bf16.msra.mxu0 %v248
    %383 = vmatprep.subr.bf16.mxu0 %v253
    %384 = vmatpush1.bf16.msra.mxu0 %v252
    %385 = vmatprep.subr.bf16.mxu0 %v257
    %386 = vmatpush1.bf16.msra.mxu0 %v256
    %387 = vmatprep.subr.bf16.mxu0 %v261
    %388 = vmatpush1.bf16.msra.mxu0 %v260
    %389 = vmatprep.subr.bf16.mxu0 %v265
    %390 = vmatpush1.bf16.msra.mxu0 %v264
    %391 = vmatprep.subr.bf16.mxu0 %v269
    %392 = vmatpush1.bf16.msra.mxu0 %v268
    %393 = vmatprep.subr.bf16.mxu0 %v273
    %394 = vmatpush1.bf16.msra.mxu0 %v272
    %395 = vmatprep.subr.bf16.mxu0 0
    %396 = vmatpush1.bf16.msra.mxu0 0
    %397 = vmatprep.subr.bf16.mxu0 0
    %398 = vmatpush1.bf16.msra.mxu0 0
    %399 = vmatprep.subr.bf16.mxu0 0
    %400 = vmatpush1.bf16.msra.mxu0 0
    %401 = vmatprep.subr.bf16.mxu0 0
    %402 = vmatpush1.bf16.msra.mxu0 0
    %403 = vmatprep.subr.bf16.mxu0 0
    %404 = vmatpush1.bf16.msra.mxu0 0
    %405 = vmatprep.subr.bf16.mxu0 0
    %406 = vmatpush1.bf16.msra.mxu0 0
    %407 = vmatprep.subr.bf16.mxu0 0
    %408 = vmatpush1.bf16.msra.mxu0 0
    %409 = vmatprep.subr.bf16.mxu0 0
    %410 = vmatpush1.bf16.msra.mxu0 0
    %411 = vmatprep.mubr.bf16.mxu0 0
    %412 = vmatmul.mubr.bf16.gmra.mrb[0].mxu0 %v138
    %v413 = vpop.f32.mrb[0].mxu0
    %v414 = vadd.f32 %v113, %v413
    %v415 = vpop.f32.mrb[0].mxu0
    %v416 = vadd.f32 %v117, %v415
    %v417 = vpop.f32.mrb[0].mxu0
    %v418 = vadd.f32 %v113, %v417
    %v419 = vpop.f32.mrb[0].mxu0
    %v420 = vadd.f32 %v117, %v419
    %421 = vmatprep.mubr.bf16.mxu0 0
    %422 = vmatmul.mubr.bf16.gmra.mrb[0].mxu0 %v139
    %v423 = vpop.f32.mrb[0].mxu0
    %v424 = vadd.f32 %v113, %v423
    %v425 = vpop.f32.mrb[0].mxu0
    %v426 = vadd.f32 %v117, %v425
    %v427 = vpop.f32.mrb[0].mxu0
    %v428 = vadd.f32 %v113, %v427
    %v429 = vpop.f32.mrb[0].mxu0
    %v430 = vadd.f32 %v117, %v429
    %431 = vmatprep.mubr.bf16.mxu0 0
    %432 = vmatmul.mubr.bf16.gmra.mrb[0].mxu0 %v140
    %v433 = vpop.f32.mrb[0].mxu0
    %v434 = vadd.f32 %v113, %v433
    %v435 = vpop.f32.mrb[0].mxu0
    %v436 = vadd.f32 %v117, %v435
    %v437 = vpop.f32.mrb[0].mxu0
    %v438 = vadd.f32 %v113, %v437
    %v439 = vpop.f32.mrb[0].mxu0
    %v440 = vadd.f32 %v117, %v439
    %441 = vmatprep.mubr.bf16.mxu0 0
    %442 = vmatmul.mubr.bf16.gmra.mrb[0].mxu0 %v141
    %v443 = vpop.f32.mrb[0].mxu0
    %v444 = vadd.f32 %v113, %v443
    %v445 = vpop.f32.mrb[0].mxu0
    %v446 = vadd.f32 %v117, %v445
    %v447 = vpop.f32.mrb[0].mxu0
    %v448 = vadd.f32 %v113, %v447
    %v449 = vpop.f32.mrb[0].mxu0
    %v450 = vadd.f32 %v117, %v449
    %451 = vdwg.mxu0
    %452 = vst [vmem:[#allocation2] sm:$0xff] %v341
    %453 = vst [vmem:[#allocation2 + $0x8] sm:$0xff] %v343
    %454 = vst [vmem:[#allocation2 + $0x10] sm:$0xff] %v414
    %455 = vst [vmem:[#allocation2 + $0x18] sm:$0xff] %v416
    %456 = vst [vmem:[#allocation2 + $0x20] sm:$0xff] %v345
    %457 = vst [vmem:[#allocation2 + $0x28] sm:$0xff] %v347
    %458 = vst [vmem:[#allocation2 + $0x30] sm:$0xff] %v418
    %459 = vst [vmem:[#allocation2 + $0x38] sm:$0xff] %v420
    %460 = vst [vmem:[#allocation2 + $0x40] sm:$0xff] %v351
    %461 = vst [vmem:[#allocation2 + $0x48] sm:$0xff] %v353
    %462 = vst [vmem:[#allocation2 + $0x50] sm:$0xff] %v424
    %463 = vst [vmem:[#allocation2 + $0x58] sm:$0xff] %v426
    %464 = vst [vmem:[#allocation2 + $0x60] sm:$0xff] %v355
    %465 = vst [vmem:[#allocation2 + $0x68] sm:$0xff] %v357
    %466 = vst [vmem:[#allocation2 + $0x70] sm:$0xff] %v428
    %467 = vst [vmem:[#allocation2 + $0x78] sm:$0xff] %v430
    %468 = vst [vmem:[#allocation2 + $0x80] sm:$0xff] %v361
    %469 = vst [vmem:[#allocation2 + $0x88] sm:$0xff] %v363
    %470 = vst [vmem:[#allocation2 + $0x90] sm:$0xff] %v434
    %471 = vst [vmem:[#allocation2 + $0x98] sm:$0xff] %v436
    %472 = vst [vmem:[#allocation2 + $0xa0] sm:$0xff] %v365
    %473 = vst [vmem:[#allocation2 + $0xa8] sm:$0xff] %v367
    %474 = vst [vmem:[#allocation2 + $0xb0] sm:$0xff] %v438
    %475 = vst [vmem:[#allocation2 + $0xb8] sm:$0xff] %v440
    %476 = vst [vmem:[#allocation2 + $0xc0] sm:$0xff] %v371
    %477 = vst [vmem:[#allocation2 + $0xc8] sm:$0xff] %v373
    %478 = vst [vmem:[#allocation2 + $0xd0] sm:$0xff] %v444
    %479 = vst [vmem:[#allocation2 + $0xd8] sm:$0xff] %v446
    %480 = vst [vmem:[#allocation2 + $0xe0] sm:$0xff] %v375
    %481 = vst [vmem:[#allocation2 + $0xe8] sm:$0xff] %v377
    %482 = vst [vmem:[#allocation2 + $0xf0] sm:$0xff] %v448
    %483 = vst [vmem:[#allocation2 + $0xf8] sm:$0xff] %v450
    %v484 = vld [vmem:[#allocation2] sm:$0xff]
    %v485 = vld [vmem:[#allocation2 + $0x8] sm:$0xff]
    %v486 = vld [vmem:[#allocation2 + $0x10] sm:$0xff]
    %v487 = vld [vmem:[#allocation2 + $0x18] sm:$0xff]
    %v488 = vld [vmem:[#allocation8] sm:$0xff]
    %v489 = vld [vmem:[#allocation8 + $0x8] sm:$0xff]
    %v490 = vld [vmem:[#allocation8 + $0x10] sm:$0xff]
    %v491 = vld [vmem:[#allocation8 + $0x18] sm:$0xff]
    %v492 = vld [vmem:[#allocation8 + $0x20] sm:$0xff]
    %v493 = vld [vmem:[#allocation8 + $0x28] sm:$0xff]
    %v494 = vld [vmem:[#allocation8 + $0x30] sm:$0xff]
    %v495 = vld [vmem:[#allocation8 + $0x38] sm:$0xff]
    %v496 = vld [vmem:[#allocation8 + $0x40] sm:$0xff]
    %v497 = vld [vmem:[#allocation8 + $0x48] sm:$0xff]
    %v498 = vld [vmem:[#allocation8 + $0x50] sm:$0xff]
    %v499 = vld [vmem:[#allocation8 + $0x58] sm:$0xff]
    %v500 = vld [vmem:[#allocation8 + $0x60] sm:$0xff]
    %v501 = vld [vmem:[#allocation8 + $0x68] sm:$0xff]
    %v502 = vld [vmem:[#allocation8 + $0x70] sm:$0xff]
    %v503 = vld [vmem:[#allocation8 + $0x78] sm:$0xff]
    %v504 = vld [vmem:[#allocation8 + $0x80] sm:$0xff]
    %v505 = vld [vmem:[#allocation8 + $0x88] sm:$0xff]
    %v506 = vld [vmem:[#allocation8 + $0x90] sm:$0xff]
    %v507 = vld [vmem:[#allocation8 + $0x98] sm:$0xff]
    %v508 = vld [vmem:[#allocation8 + $0xa0] sm:$0xff]
    %v509 = vld [vmem:[#allocation8 + $0xa8] sm:$0xff]
    %v510 = vld [vmem:[#allocation8 + $0xb0] sm:$0xff]
    %v511 = vld [vmem:[#allocation8 + $0xb8] sm:$0xff]
    %v512 = vld [vmem:[#allocation8 + $0xc0] sm:$0xff]
    %v513 = vld [vmem:[#allocation8 + $0xc8] sm:$0xff]
    %v514 = vld [vmem:[#allocation8 + $0xd0] sm:$0xff]
    %v515 = vld [vmem:[#allocation8 + $0xd8] sm:$0xff]
    %v516 = vld [vmem:[#allocation8 + $0xe0] sm:$0xff]
    %v517 = vld [vmem:[#allocation8 + $0xe8] sm:$0xff]
    %v518 = vld [vmem:[#allocation8 + $0xf0] sm:$0xff]
    %v519 = vld [vmem:[#allocation8 + $0xf8] sm:$0xff]
    %v552 = vunpack.c.l.b16 %v488
    %v553 = vunpack.c.h.b16 %v488
    %v554 = vunpack.c.l.b16 %v489
    %v555 = vunpack.c.h.b16 %v489
    %v556 = vunpack.c.l.b16 %v490
    %v557 = vunpack.c.h.b16 %v490
    %v558 = vunpack.c.l.b16 %v491
    %v559 = vunpack.c.h.b16 %v491
    %v560 = vunpack.c.l.b16 %v492
    %v561 = vunpack.c.h.b16 %v492
    %v562 = vunpack.c.l.b16 %v493
    %v563 = vunpack.c.h.b16 %v493
    %v564 = vunpack.c.l.b16 %v494
    %v565 = vunpack.c.h.b16 %v494
    %v566 = vunpack.c.l.b16 %v495
    %v567 = vunpack.c.h.b16 %v495
    %v568 = vunpack.c.l.b16 %v496
    %v569 = vunpack.c.h.b16 %v496
    %v570 = vunpack.c.l.b16 %v497
    %v571 = vunpack.c.h.b16 %v497
    %v572 = vunpack.c.l.b16 %v498
    %v573 = vunpack.c.h.b16 %v498
    %v574 = vunpack.c.l.b16 %v499
    %v575 = vunpack.c.h.b16 %v499
    %v576 = vunpack.c.l.b16 %v500
    %v577 = vunpack.c.h.b16 %v500
    %v578 = vunpack.c.l.b16 %v501
    %v579 = vunpack.c.h.b16 %v501
    %v580 = vunpack.c.l.b16 %v502
    %v581 = vunpack.c.h.b16 %v502
    %v582 = vunpack.c.l.b16 %v503
    %v583 = vunpack.c.h.b16 %v503
    %v584 = vunpack.c.l.b16 %v504
    %v585 = vunpack.c.h.b16 %v504
    %v586 = vunpack.c.l.b16 %v505
    %v587 = vunpack.c.h.b16 %v505
    %v588 = vunpack.c.l.b16 %v506
    %v589 = vunpack.c.h.b16 %v506
    %v590 = vunpack.c.l.b16 %v507
    %v591 = vunpack.c.h.b16 %v507
    %v592 = vunpack.c.l.b16 %v508
    %v593 = vunpack.c.h.b16 %v508
    %v594 = vunpack.c.l.b16 %v509
    %v595 = vunpack.c.h.b16 %v509
    %v596 = vunpack.c.l.b16 %v510
    %v597 = vunpack.c.h.b16 %v510
    %v598 = vunpack.c.l.b16 %v511
    %v599 = vunpack.c.h.b16 %v511
    %v600 = vunpack.c.l.b16 %v512
    %v601 = vunpack.c.h.b16 %v512
    %v602 = vunpack.c.l.b16 %v513
    %v603 = vunpack.c.h.b16 %v513
    %v604 = vunpack.c.l.b16 %v514
    %v605 = vunpack.c.h.b16 %v514
    %v606 = vunpack.c.l.b16 %v515
    %v607 = vunpack.c.h.b16 %v515
    %v608 = vunpack.c.l.b16 %v516
    %v609 = vunpack.c.h.b16 %v516
    %v610 = vunpack.c.l.b16 %v517
    %v611 = vunpack.c.h.b16 %v517
    %v612 = vunpack.c.l.b16 %v518
    %v613 = vunpack.c.h.b16 %v518
    %v614 = vunpack.c.l.b16 %v519
    %v615 = vunpack.c.h.b16 %v519
    %v616 = vpack.c.b16 %v556, %v552
    %v617 = vpack.c.b16 %v557, %v553
    %v618 = vpack.c.b16 %v558, %v554
    %v619 = vpack.c.b16 %v559, %v555
    %v620 = vpack.c.b16 %v564, %v560
    %v621 = vpack.c.b16 %v565, %v561
    %v622 = vpack.c.b16 %v566, %v562
    %v623 = vpack.c.b16 %v567, %v563
    %v624 = vpack.c.b16 %v572, %v568
    %v625 = vpack.c.b16 %v573, %v569
    %v626 = vpack.c.b16 %v574, %v570
    %v627 = vpack.c.b16 %v575, %v571
    %v628 = vpack.c.b16 %v580, %v576
    %v629 = vpack.c.b16 %v581, %v577
    %v630 = vpack.c.b16 %v582, %v578
    %v631 = vpack.c.b16 %v583, %v579
    %v632 = vpack.c.b16 %v588, %v584
    %v633 = vpack.c.b16 %v589, %v585
    %v634 = vpack.c.b16 %v590, %v586
    %v635 = vpack.c.b16 %v591, %v587
    %v636 = vpack.c.b16 %v596, %v592
    %v637 = vpack.c.b16 %v597, %v593
    %v638 = vpack.c.b16 %v598, %v594
    %v639 = vpack.c.b16 %v599, %v595
    %v640 = vpack.c.b16 %v604, %v600
    %v641 = vpack.c.b16 %v605, %v601
    %v642 = vpack.c.b16 %v606, %v602
    %v643 = vpack.c.b16 %v607, %v603
    %v644 = vpack.c.b16 %v612, %v608
    %v645 = vpack.c.b16 %v613, %v609
    %v646 = vpack.c.b16 %v614, %v610
    %v647 = vpack.c.b16 %v615, %v611
    %680 = vmatprep.subr.bf16.mxu0 %v617
    %681 = vmatpush1.bf16.msra.mxu0 %v616
    %682 = vmatprep.subr.bf16.mxu0 %v621
    %683 = vmatpush1.bf16.msra.mxu0 %v620
    %684 = vmatprep.subr.bf16.mxu0 %v625
    %685 = vmatpush1.bf16.msra.mxu0 %v624
    %686 = vmatprep.subr.bf16.mxu0 %v629
    %687 = vmatpush1.bf16.msra.mxu0 %v628
    %688 = vmatprep.subr.bf16.mxu0 %v633
    %689 = vmatpush1.bf16.msra.mxu0 %v632
    %690 = vmatprep.subr.bf16.mxu0 %v637
    %691 = vmatpush1.bf16.msra.mxu0 %v636
    %692 = vmatprep.subr.bf16.mxu0 %v641
    %693 = vmatpush1.bf16.msra.mxu0 %v640
    %694 = vmatprep.subr.bf16.mxu0 %v645
    %695 = vmatpush1.bf16.msra.mxu0 %v644
    %696 = vmatprep.subr.bf16.mxu0 0
    %697 = vmatpush1.bf16.msra.mxu0 0
    %698 = vmatprep.subr.bf16.mxu0 0
    %699 = vmatpush1.bf16.msra.mxu0 0
    %700 = vmatprep.subr.bf16.mxu0 0
    %701 = vmatpush1.bf16.msra.mxu0 0
    %702 = vmatprep.subr.bf16.mxu0 0
    %703 = vmatpush1.bf16.msra.mxu0 0
    %704 = vmatprep.subr.bf16.mxu0 0
    %705 = vmatpush1.bf16.msra.mxu0 0
    %706 = vmatprep.subr.bf16.mxu0 0
    %707 = vmatpush1.bf16.msra.mxu0 0
    %708 = vmatprep.subr.bf16.mxu0 0
    %709 = vmatpush1.bf16.msra.mxu0 0
    %710 = vmatprep.subr.bf16.mxu0 0
    %711 = vmatpush1.bf16.msra.mxu0 0
    %712 = vmatprep.mubr.bf16.mxu0 0
    %713 = vmatmul.mubr.bf16.gmra.mrb[0].mxu0 0
    %v714 = vpop.f32.mrb[0].mxu0
    %v715 = vadd.f32 0.0, %v714
    %v716 = vpop.f32.mrb[0].mxu0
    %v717 = vadd.f32 0.0, %v716
    %v718 = vpop.f32.mrb[0].mxu0
    %v719 = vpop.f32.mrb[0].mxu0
    %720 = vdwg.mxu0
    %721 = vmatprep.subr.bf16.mxu0 %v619
    %722 = vmatpush1.bf16.msra.mxu0 %v618
    %723 = vmatprep.subr.bf16.mxu0 %v623
    %724 = vmatpush1.bf16.msra.mxu0 %v622
    %725 = vmatprep.subr.bf16.mxu0 %v627
    %726 = vmatpush1.bf16.msra.mxu0 %v626
    %727 = vmatprep.subr.bf16.mxu0 %v631
    %728 = vmatpush1.bf16.msra.mxu0 %v630
    %729 = vmatprep.subr.bf16.mxu0 %v635
    %730 = vmatpush1.bf16.msra.mxu0 %v634
    %731 = vmatprep.subr.bf16.mxu0 %v639
    %732 = vmatpush1.bf16.msra.mxu0 %v638
    %733 = vmatprep.subr.bf16.mxu0 %v643
    %734 = vmatpush1.bf16.msra.mxu0 %v642
    %735 = vmatprep.subr.bf16.mxu0 %v647
    %736 = vmatpush1.bf16.msra.mxu0 %v646
    %737 = vmatprep.subr.bf16.mxu0 0
    %738 = vmatpush1.bf16.msra.mxu0 0
    %739 = vmatprep.subr.bf16.mxu0 0
    %740 = vmatpush1.bf16.msra.mxu0 0
    %741 = vmatprep.subr.bf16.mxu0 0
    %742 = vmatpush1.bf16.msra.mxu0 0
    %743 = vmatprep.subr.bf16.mxu0 0
    %744 = vmatpush1.bf16.msra.mxu0 0
    %745 = vmatprep.subr.bf16.mxu0 0
    %746 = vmatpush1.bf16.msra.mxu0 0
    %747 = vmatprep.subr.bf16.mxu0 0
    %748 = vmatpush1.bf16.msra.mxu0 0
    %749 = vmatprep.subr.bf16.mxu0 0
    %750 = vmatpush1.bf16.msra.mxu0 0
    %751 = vmatprep.subr.bf16.mxu0 0
    %752 = vmatpush1.bf16.msra.mxu0 0
    %753 = vmatprep.mubr.bf16.mxu0 0
    %754 = vmatmul.mubr.bf16.gmra.mrb[0].mxu0 0
    %v755 = vpop.f32.mrb[0].mxu0
    %v756 = vadd.f32 0.0, %v755
    %v757 = vpop.f32.mrb[0].mxu0
    %v758 = vadd.f32 0.0, %v757
    %v759 = vpop.f32.mrb[0].mxu0
    %v760 = vpop.f32.mrb[0].mxu0
    %761 = vdwg.mxu0
    %v762 = vadd.f32 %v484, %v715
    %v763 = vadd.f32 %v485, %v717
    %v764 = vadd.f32 %v486, %v756
    %v765 = vadd.f32 %v487, %v758
    %v766 = vxor.u32 %v762, 2147483648
    %v767 = vmul.f32 %v766, 1.442695
    %v768 = vpow.pop %v767
    %v769 = vadd.f32 %v768, 1.0
    %v770 = vrcp.pop %v769
    %v771 = vmul.f32 1.0, %v770
    %v772 = vxor.u32 %v763, 2147483648
    %v773 = vmul.f32 %v772, 1.442695
    %v774 = vpow.pop %v773
    %v775 = vadd.f32 %v774, 1.0
    %v776 = vrcp.pop %v775
    %v777 = vmul.f32 1.0, %v776
    %v778 = vtanh.pop %v764
    %v779 = vxor.u32 %v765, 2147483648
    %v780 = vmul.f32 %v779, 1.442695
    %v781 = vpow.pop %v780
    %v782 = vadd.f32 %v781, 1.0
    %v783 = vrcp.pop %v782
    %v784 = vmul.f32 1.0, %v783
    %v785 = vmul.f32 %v777, 0.0
    %v786 = vmul.f32 %v771, %v778
    %v787 = vadd.f32 %v785, %v786
    %v788 = vtanh.pop %v787
    %v789 = vmul.f32 %v784, %v788
    %v790 = vld [vmem:[#allocation2 + $0x20] sm:$0xff]
    %v791 = vld [vmem:[#allocation2 + $0x28] sm:$0xff]
    %v792 = vld [vmem:[#allocation2 + $0x30] sm:$0xff]
    %v793 = vld [vmem:[#allocation2 + $0x38] sm:$0xff]
    %v794 = vpack.c.bf16 %v789, %v789
    %795 = vmatprep.subr.bf16.mxu0 %v617
    %796 = vmatpush1.bf16.msra.mxu0 %v616
    %797 = vmatprep.subr.bf16.mxu0 %v621
    %798 = vmatpush1.bf16.msra.mxu0 %v620
    %799 = vmatprep.subr.bf16.mxu0 %v625
    %800 = vmatpush1.bf16.msra.mxu0 %v624
    %801 = vmatprep.subr.bf16.mxu0 %v629
    %802 = vmatpush1.bf16.msra.mxu0 %v628
    %803 = vmatprep.subr.bf16.mxu0 %v633
    %804 = vmatpush1.bf16.msra.mxu0 %v632
    %805 = vmatprep.subr.bf16.mxu0 %v637
    %806 = vmatpush1.bf16.msra.mxu0 %v636
    %807 = vmatprep.subr.bf16.mxu0 %v641
    %808 = vmatpush1.bf16.msra.mxu0 %v640
    %809 = vmatprep.subr.bf16.mxu0 %v645
    %810 = vmatpush1.bf16.msra.mxu0 %v644
    %811 = vmatprep.subr.bf16.mxu0 0
    %812 = vmatpush1.bf16.msra.mxu0 0
    %813 = vmatprep.subr.bf16.mxu0 0
    %814 = vmatpush1.bf16.msra.mxu0 0
    %815 = vmatprep.subr.bf16.mxu0 0
    %816 = vmatpush1.bf16.msra.mxu0 0
    %817 = vmatprep.subr.bf16.mxu0 0
    %818 = vmatpush1.bf16.msra.mxu0 0
    %819 = vmatprep.subr.bf16.mxu0 0
    %820 = vmatpush1.bf16.msra.mxu0 0
    %821 = vmatprep.subr.bf16.mxu0 0
    %822 = vmatpush1.bf16.msra.mxu0 0
    %823 = vmatprep.subr.bf16.mxu0 0
    %824 = vmatpush1.bf16.msra.mxu0 0
    %825 = vmatprep.subr.bf16.mxu0 0
    %826 = vmatpush1.bf16.msra.mxu0 0
    %827 = vmatprep.mubr.bf16.mxu0 0
    %828 = vmatmul.mubr.bf16.gmra.mrb[0].mxu0 %v794
    %v829 = vpop.f32.mrb[0].mxu0
    %v830 = vadd.f32 0.0, %v829
    %v831 = vpop.f32.mrb[0].mxu0
    %v832 = vadd.f32 0.0, %v831
    %v833 = vpop.f32.mrb[0].mxu0
    %v834 = vpop.f32.mrb[0].mxu0
    %835 = vdwg.mxu0
    %836 = vmatprep.subr.bf16.mxu0 %v619
    %837 = vmatpush1.bf16.msra.mxu0 %v618
    %838 = vmatprep.subr.bf16.mxu0 %v623
    %839 = vmatpush1.bf16.msra.mxu0 %v622
    %840 = vmatprep.subr.bf16.mxu0 %v627
    %841 = vmatpush1.bf16.msra.mxu0 %v626
    %842 = vmatprep.subr.bf16.mxu0 %v631
    %843 = vmatpush1.bf16.msra.mxu0 %v630
    %844 = vmatprep.subr.bf16.mxu0 %v635
    %845 = vmatpush1.bf16.msra.mxu0 %v634
    %846 = vmatprep.subr.bf16.mxu0 %v639
    %847 = vmatpush1.bf16.msra.mxu0 %v638
    %848 = vmatprep.subr.bf16.mxu0 %v643
    %849 = vmatpush1.bf16.msra.mxu0 %v642
    %850 = vmatprep.subr.bf16.mxu0 %v647
    %851 = vmatpush1.bf16.msra.mxu0 %v646
    %852 = vmatprep.subr.bf16.mxu0 0
    %853 = vmatpush1.bf16.msra.mxu0 0
    %854 = vmatprep.subr.bf16.mxu0 0
    %855 = vmatpush1.bf16.msra.mxu0 0
    %856 = vmatprep.subr.bf16.mxu0 0
    %857 = vmatpush1.bf16.msra.mxu0 0
    %858 = vmatprep.subr.bf16.mxu0 0
    %859 = vmatpush1.bf16.msra.mxu0 0
    %860 = vmatprep.subr.bf16.mxu0 0
    %861 = vmatpush1.bf16.msra.mxu0 0
    %862 = vmatprep.subr.bf16.mxu0 0
    %863 = vmatpush1.bf16.msra.mxu0 0
    %864 = vmatprep.subr.bf16.mxu0 0
    %865 = vmatpush1.bf16.msra.mxu0 0
    %866 = vmatprep.subr.bf16.mxu0 0
    %867 = vmatpush1.bf16.msra.mxu0 0
    %868 = vmatprep.mubr.bf16.mxu0 0
    %869 = vmatmul.mubr.bf16.gmra.mrb[0].mxu0 %v794
    %v870 = vpop.f32.mrb[0].mxu0
    %v871 = vadd.f32 0.0, %v870
    %v872 = vpop.f32.mrb[0].mxu0
    %v873 = vadd.f32 0.0, %v872
    %v874 = vpop.f32.mrb[0].mxu0
    %v875 = vpop.f32.mrb[0].mxu0
    %876 = vdwg.mxu0
    %v877 = vadd.f32 %v790, %v830
    %v878 = vadd.f32 %v791, %v832
    %v879 = vadd.f32 %v792, %v871
    %v880 = vadd.f32 %v793, %v873
    %v881 = vxor.u32 %v877, 2147483648
    %v882 = vmul.f32 %v881, 1.442695
    %v883 = vpow.pop %v882
    %v884 = vadd.f32 %v883, 1.0
    %v885 = vrcp.pop %v884
    %v886 = vmul.f32 1.0, %v885
    %v887 = vxor.u32 %v878, 2147483648
    %v888 = vmul.f32 %v887, 1.442695
    %v889 = vpow.pop %v888
    %v890 = vadd.f32 %v889, 1.0
    %v891 = vrcp.pop %v890
    %v892 = vmul.f32 1.0, %v891
    %v893 = vtanh.pop %v879
    %v894 = vxor.u32 %v880, 2147483648
    %v895 = vmul.f32 %v894, 1.442695
    %v896 = vpow.pop %v895
    %v897 = vadd.f32 %v896, 1.0
    %v898 = vrcp.pop %v897
    %v899 = vmul.f32 1.0, %v898
    %v900 = vmul.f32 %v892, %v787
    %v901 = vmul.f32 %v886, %v893
    %v902 = vadd.f32 %v900, %v901
    %v903 = vtanh.pop %v902
    %v904 = vmul.f32 %v899, %v903
    %v905 = vld [vmem:[#allocation2 + $0x40] sm:$0xff]
    %v906 = vld [vmem:[#allocation2 + $0x48] sm:$0xff]
    %v907 = vld [vmem:[#allocation2 + $0x50] sm:$0xff]
    %v908 = vld [vmem:[#allocation2 + $0x58] sm:$0xff]
    %v909 = vpack.c.bf16 %v904, %v904
    %910 = vmatprep.subr.bf16.mxu0 %v617
    %911 = vmatpush1.bf16.msra.mxu0 %v616
    %912 = vmatprep.subr.bf16.mxu0 %v621
    %913 = vmatpush1.bf16.msra.mxu0 %v620
    %914 = vmatprep.subr.bf16.mxu0 %v625
    %915 = vmatpush1.bf16.msra.mxu0 %v624
    %916 = vmatprep.subr.bf16.mxu0 %v629
    %917 = vmatpush1.bf16.msra.mxu0 %v628
    %918 = vmatprep.subr.bf16.mxu0 %v633
    %919 = vmatpush1.bf16.msra.mxu0 %v632
    %920 = vmatprep.subr.bf16.mxu0 %v637
    %921 = vmatpush1.bf16.msra.mxu0 %v636
    %922 = vmatprep.subr.bf16.mxu0 %v641
    %923 = vmatpush1.bf16.msra.mxu0 %v640
    %924 = vmatprep.subr.bf16.mxu0 %v645
    %925 = vmatpush1.bf16.msra.mxu0 %v644
    %926 = vmatprep.subr.bf16.mxu0 0
    %927 = vmatpush1.bf16.msra.mxu0 0
    %928 = vmatprep.subr.bf16.mxu0 0
    %929 = vmatpush1.bf16.msra.mxu0 0
    %930 = vmatprep.subr.bf16.mxu0 0
    %931 = vmatpush1.bf16.msra.mxu0 0
    %932 = vmatprep.subr.bf16.mxu0 0
    %933 = vmatpush1.bf16.msra.mxu0 0
    %934 = vmatprep.subr.bf16.mxu0 0
    %935 = vmatpush1.bf16.msra.mxu0 0
    %936 = vmatprep.subr.bf16.mxu0 0
    %937 = vmatpush1.bf16.msra.mxu0 0
    %938 = vmatprep.subr.bf16.mxu0 0
    %939 = vmatpush1.bf16.msra.mxu0 0
    %940 = vmatprep.subr.bf16.mxu0 0
    %941 = vmatpush1.bf16.msra.mxu0 0
    %942 = vmatprep.mubr.bf16.mxu0 0
    %943 = vmatmul.mubr.bf16.gmra.mrb[0].mxu0 %v909
    %v944 = vpop.f32.mrb[0].mxu0
    %v945 = vadd.f32 0.0, %v944
    %v946 = vpop.f32.mrb[0].mxu0
    %v947 = vadd.f32 0.0, %v946
    %v948 = vpop.f32.mrb[0].mxu0
    %v949 = vpop.f32.mrb[0].mxu0
    %950 = vdwg.mxu0
    %951 = vmatprep.subr.bf16.mxu0 %v619
    %952 = vmatpush1.bf16.msra.mxu0 %v618
    %953 = vmatprep.subr.bf16.mxu0 %v623
    %954 = vmatpush1.bf16.msra.mxu0 %v622
    %955 = vmatprep.subr.bf16.mxu0 %v627
    %956 = vmatpush1.bf16.msra.mxu0 %v626
    %957 = vmatprep.subr.bf16.mxu0 %v631
    %958 = vmatpush1.bf16.msra.mxu0 %v630
    %959 = vmatprep.subr.bf16.mxu0 %v635
    %960 = vmatpush1.bf16.msra.mxu0 %v634
    %961 = vmatprep.subr.bf16.mxu0 %v639
    %962 = vmatpush1.bf16.msra.mxu0 %v638
    %963 = vmatprep.subr.bf16.mxu0 %v643
    %964 = vmatpush1.bf16.msra.mxu0 %v642
    %965 = vmatprep.subr.bf16.mxu0 %v647
    %966 = vmatpush1.bf16.msra.mxu0 %v646
    %967 = vmatprep.subr.bf16.mxu0 0
    %968 = vmatpush1.bf16.msra.mxu0 0
    %969 = vmatprep.subr.bf16.mxu0 0
    %970 = vmatpush1.bf16.msra.mxu0 0
    %971 = vmatprep.subr.bf16.mxu0 0
    %972 = vmatpush1.bf16.msra.mxu0 0
    %973 = vmatprep.subr.bf16.mxu0 0
    %974 = vmatpush1.bf16.msra.mxu0 0
    %975 = vmatprep.subr.bf16.mxu0 0
    %976 = vmatpush1.bf16.msra.mxu0 0
    %977 = vmatprep.subr.bf16.mxu0 0
    %978 = vmatpush1.bf16.msra.mxu0 0
    %979 = vmatprep.subr.bf16.mxu0 0
    %980 = vmatpush1.bf16.msra.mxu0 0
    %981 = vmatprep.subr.bf16.mxu0 0
    %982 = vmatpush1.bf16.msra.mxu0 0
    %983 = vmatprep.mubr.bf16.mxu0 0
    %984 = vmatmul.mubr.bf16.gmra.mrb[0].mxu0 %v909
    %v985 = vpop.f32.mrb[0].mxu0
    %v986 = vadd.f32 0.0, %v985
    %v987 = vpop.f32.mrb[0].mxu0
    %v988 = vadd.f32 0.0, %v987
    %v989 = vpop.f32.mrb[0].mxu0
    %v990 = vpop.f32.mrb[0].mxu0
    %991 = vdwg.mxu0
    %v992 = vadd.f32 %v905, %v945
    %v993 = vadd.f32 %v906, %v947
    %v994 = vadd.f32 %v907, %v986
    %v995 = vadd.f32 %v908, %v988
    %v996 = vxor.u32 %v992, 2147483648
    %v997 = vmul.f32 %v996, 1.442695
    %v998 = vpow.pop %v997
    %v999 = vadd.f32 %v998, 1.0
    %v1000 = vrcp.pop %v999
    %v1001 = vmul.f32 1.0, %v1000
    %v1002 = vxor.u32 %v993, 2147483648
    %v1003 = vmul.f32 %v1002, 1.442695
    %v1004 = vpow.pop %v1003
    %v1005 = vadd.f32 %v1004, 1.0
    %v1006 = vrcp.pop %v1005
    %v1007 = vmul.f32 1.0, %v1006
    %v1008 = vtanh.pop %v994
    %v1009 = vxor.u32 %v995, 2147483648
    %v1010 = vmul.f32 %v1009, 1.442695
    %v1011 = vpow.pop %v1010
    %v1012 = vadd.f32 %v1011, 1.0
    %v1013 = vrcp.pop %v1012
    %v1014 = vmul.f32 1.0, %v1013
    %v1015 = vmul.f32 %v1007, %v902
    %v1016 = vmul.f32 %v1001, %v1008
    %v1017 = vadd.f32 %v1015, %v1016
    %v1018 = vtanh.pop %v1017
    %v1019 = vmul.f32 %v1014, %v1018
    %v1020 = vld [vmem:[#allocation2 + $0x60] sm:$0xff]
    %v1021 = vld [vmem:[#allocation2 + $0x68] sm:$0xff]
    %v1022 = vld [vmem:[#allocation2 + $0x70] sm:$0xff]
    %v1023 = vld [vmem:[#allocation2 + $0x78] sm:$0xff]
    %v1024 = vpack.c.bf16 %v1019, %v1019
    %1025 = vmatprep.subr.bf16.mxu0 %v617
    %1026 = vmatpush1.bf16.msra.mxu0 %v616
    %1027 = vmatprep.subr.bf16.mxu0 %v621
    %1028 = vmatpush1.bf16.msra.mxu0 %v620
    %1029 = vmatprep.subr.bf16.mxu0 %v625
    %1030 = vmatpush1.bf16.msra.mxu0 %v624
    %1031 = vmatprep.subr.bf16.mxu0 %v629
    %1032 = vmatpush1.bf16.msra.mxu0 %v628
    %1033 = vmatprep.subr.bf16.mxu0 %v633
    %1034 = vmatpush1.bf16.msra.mxu0 %v632
    %1035 = vmatprep.subr.bf16.mxu0 %v637
    %1036 = vmatpush1.bf16.msra.mxu0 %v636
    %1037 = vmatprep.subr.bf16.mxu0 %v641
    %1038 = vmatpush1.bf16.msra.mxu0 %v640
    %1039 = vmatprep.subr.bf16.mxu0 %v645
    %1040 = vmatpush1.bf16.msra.mxu0 %v644
    %1041 = vmatprep.subr.bf16.mxu0 0
    %1042 = vmatpush1.bf16.msra.mxu0 0
    %1043 = vmatprep.subr.bf16.mxu0 0
    %1044 = vmatpush1.bf16.msra.mxu0 0
    %1045 = vmatprep.subr.bf16.mxu0 0
    %1046 = vmatpush1.bf16.msra.mxu0 0
    %1047 = vmatprep.subr.bf16.mxu0 0
    %1048 = vmatpush1.bf16.msra.mxu0 0
    %1049 = vmatprep.subr.bf16.mxu0 0
    %1050 = vmatpush1.bf16.msra.mxu0 0
    %1051 = vmatprep.subr.bf16.mxu0 0
    %1052 = vmatpush1.bf16.msra.mxu0 0
    %1053 = vmatprep.subr.bf16.mxu0 0
    %1054 = vmatpush1.bf16.msra.mxu0 0
    %1055 = vmatprep.subr.bf16.mxu0 0
    %1056 = vmatpush1.bf16.msra.mxu0 0
    %1057 = vmatprep.mubr.bf16.mxu0 0
    %1058 = vmatmul.mubr.bf16.gmra.mrb[0].mxu0 %v1024
    %v1059 = vpop.f32.mrb[0].mxu0
    %v1060 = vadd.f32 0.0, %v1059
    %v1061 = vpop.f32.mrb[0].mxu0
    %v1062 = vadd.f32 0.0, %v1061
    %v1063 = vpop.f32.mrb[0].mxu0
    %v1064 = vpop.f32.mrb[0].mxu0
    %1065 = vdwg.mxu0
    %1066 = vmatprep.subr.bf16.mxu0 %v619
    %1067 = vmatpush1.bf16.msra.mxu0 %v618
    %1068 = vmatprep.subr.bf16.mxu0 %v623
    %1069 = vmatpush1.bf16.msra.mxu0 %v622
    %1070 = vmatprep.subr.bf16.mxu0 %v627
    %1071 = vmatpush1.bf16.msra.mxu0 %v626
    %1072 = vmatprep.subr.bf16.mxu0 %v631
    %1073 = vmatpush1.bf16.msra.mxu0 %v630
    %1074 = vmatprep.subr.bf16.mxu0 %v635
    %1075 = vmatpush1.bf16.msra.mxu0 %v634
    %1076 = vmatprep.subr.bf16.mxu0 %v639
    %1077 = vmatpush1.bf16.msra.mxu0 %v638
    %1078 = vmatprep.subr.bf16.mxu0 %v643
    %1079 = vmatpush1.bf16.msra.mxu0 %v642
    %1080 = vmatprep.subr.bf16.mxu0 %v647
    %1081 = vmatpush1.bf16.msra.mxu0 %v646
    %1082 = vmatprep.subr.bf16.mxu0 0
    %1083 = vmatpush1.bf16.msra.mxu0 0
    %1084 = vmatprep.subr.bf16.mxu0 0
    %1085 = vmatpush1.bf16.msra.mxu0 0
    %1086 = vmatprep.subr.bf16.mxu0 0
    %1087 = vmatpush1.bf16.msra.mxu0 0
    %1088 = vmatprep.subr.bf16.mxu0 0
    %1089 = vmatpush1.bf16.msra.mxu0 0
    %1090 = vmatprep.subr.bf16.mxu0 0
    %1091 = vmatpush1.bf16.msra.mxu0 0
    %1092 = vmatprep.subr.bf16.mxu0 0
    %1093 = vmatpush1.bf16.msra.mxu0 0
    %1094 = vmatprep.subr.bf16.mxu0 0
    %1095 = vmatpush1.bf16.msra.mxu0 0
    %1096 = vmatprep.subr.bf16.mxu0 0
    %1097 = vmatpush1.bf16.msra.mxu0 0
    %1098 = vmatprep.mubr.bf16.mxu0 0
    %1099 = vmatmul.mubr.bf16.gmra.mrb[0].mxu0 %v1024
    %v1100 = vpop.f32.mrb[0].mxu0
    %v1101 = vadd.f32 0.0, %v1100
    %v1102 = vpop.f32.mrb[0].mxu0
    %v1103 = vadd.f32 0.0, %v1102
    %v1104 = vpop.f32.mrb[0].mxu0
    %v1105 = vpop.f32.mrb[0].mxu0
    %1106 = vdwg.mxu0
    %v1107 = vadd.f32 %v1020, %v1060
    %v1108 = vadd.f32 %v1021, %v1062
    %v1109 = vadd.f32 %v1022, %v1101
    %v1110 = vadd.f32 %v1023, %v1103
    %v1111 = vxor.u32 %v1107, 2147483648
    %v1112 = vmul.f32 %v1111, 1.442695
    %v1113 = vpow.pop %v1112
    %v1114 = vadd.f32 %v1113, 1.0
    %v1115 = vrcp.pop %v1114
    %v1116 = vmul.f32 1.0, %v1115
    %v1117 = vxor.u32 %v1108, 2147483648
    %v1118 = vmul.f32 %v1117, 1.442695
    %v1119 = vpow.pop %v1118
    %v1120 = vadd.f32 %v1119, 1.0
    %v1121 = vrcp.pop %v1120
    %v1122 = vmul.f32 1.0, %v1121
    %v1123 = vtanh.pop %v1109
    %v1124 = vxor.u32 %v1110, 2147483648
    %v1125 = vmul.f32 %v1124, 1.442695
    %v1126 = vpow.pop %v1125
    %v1127 = vadd.f32 %v1126, 1.0
    %v1128 = vrcp.pop %v1127
    %v1129 = vmul.f32 1.0, %v1128
    %v1130 = vmul.f32 %v1122, %v1017
    %v1131 = vmul.f32 %v1116, %v1123
    %v1132 = vadd.f32 %v1130, %v1131
    %v1133 = vtanh.pop %v1132
    %v1134 = vmul.f32 %v1129, %v1133
    %v1135 = vld [vmem:[#allocation2 + $0x80] sm:$0xff]
    %v1136 = vld [vmem:[#allocation2 + $0x88] sm:$0xff]
    %v1137 = vld [vmem:[#allocation2 + $0x90] sm:$0xff]
    %v1138 = vld [vmem:[#allocation2 + $0x98] sm:$0xff]
    %v1139 = vpack.c.bf16 %v1134, %v1134
    %1140 = vmatprep.subr.bf16.mxu0 %v617
    %1141 = vmatpush1.bf16.msra.mxu0 %v616
    %1142 = vmatprep.subr.bf16.mxu0 %v621
    %1143 = vmatpush1.bf16.msra.mxu0 %v620
    %1144 = vmatprep.subr.bf16.mxu0 %v625
    %1145 = vmatpush1.bf16.msra.mxu0 %v624
    %1146 = vmatprep.subr.bf16.mxu0 %v629
    %1147 = vmatpush1.bf16.msra.mxu0 %v628
    %1148 = vmatprep.subr.bf16.mxu0 %v633
    %1149 = vmatpush1.bf16.msra.mxu0 %v632
    %1150 = vmatprep.subr.bf16.mxu0 %v637
    %1151 = vmatpush1.bf16.msra.mxu0 %v636
    %1152 = vmatprep.subr.bf16.mxu0 %v641
    %1153 = vmatpush1.bf16.msra.mxu0 %v640
    %1154 = vmatprep.subr.bf16.mxu0 %v645
    %1155 = vmatpush1.bf16.msra.mxu0 %v644
    %1156 = vmatprep.subr.bf16.mxu0 0
    %1157 = vmatpush1.bf16.msra.mxu0 0
    %1158 = vmatprep.subr.bf16.mxu0 0
    %1159 = vmatpush1.bf16.msra.mxu0 0
    %1160 = vmatprep.subr.bf16.mxu0 0
    %1161 = vmatpush1.bf16.msra.mxu0 0
    %1162 = vmatprep.subr.bf16.mxu0 0
    %1163 = vmatpush1.bf16.msra.mxu0 0
    %1164 = vmatprep.subr.bf16.mxu0 0
    %1165 = vmatpush1.bf16.msra.mxu0 0
    %1166 = vmatprep.subr.bf16.mxu0 0
    %1167 = vmatpush1.bf16.msra.mxu0 0
    %1168 = vmatprep.subr.bf16.mxu0 0
    %1169 = vmatpush1.bf16.msra.mxu0 0
    %1170 = vmatprep.subr.bf16.mxu0 0
    %1171 = vmatpush1.bf16.msra.mxu0 0
    %1172 = vmatprep.mubr.bf16.mxu0 0
    %1173 = vmatmul.mubr.bf16.gmra.mrb[0].mxu0 %v1139
    %v1174 = vpop.f32.mrb[0].mxu0
    %v1175 = vadd.f32 0.0, %v1174
    %v1176 = vpop.f32.mrb[0].mxu0
    %v1177 = vadd.f32 0.0, %v1176
    %v1178 = vpop.f32.mrb[0].mxu0
    %v1179 = vpop.f32.mrb[0].mxu0
    %1180 = vdwg.mxu0
    %1181 = vmatprep.subr.bf16.mxu0 %v619
    %1182 = vmatpush1.bf16.msra.mxu0 %v618
    %1183 = vmatprep.subr.bf16.mxu0 %v623
    %1184 = vmatpush1.bf16.msra.mxu0 %v622
    %1185 = vmatprep.subr.bf16.mxu0 %v627
    %1186 = vmatpush1.bf16.msra.mxu0 %v626
    %1187 = vmatprep.subr.bf16.mxu0 %v631
    %1188 = vmatpush1.bf16.msra.mxu0 %v630
    %1189 = vmatprep.subr.bf16.mxu0 %v635
    %1190 = vmatpush1.bf16.msra.mxu0 %v634
    %1191 = vmatprep.subr.bf16.mxu0 %v639
    %1192 = vmatpush1.bf16.msra.mxu0 %v638
    %1193 = vmatprep.subr.bf16.mxu0 %v643
    %1194 = vmatpush1.bf16.msra.mxu0 %v642
    %1195 = vmatprep.subr.bf16.mxu0 %v647
    %1196 = vmatpush1.bf16.msra.mxu0 %v646
    %1197 = vmatprep.subr.bf16.mxu0 0
    %1198 = vmatpush1.bf16.msra.mxu0 0
    %1199 = vmatprep.subr.bf16.mxu0 0
    %1200 = vmatpush1.bf16.msra.mxu0 0
    %1201 = vmatprep.subr.bf16.mxu0 0
    %1202 = vmatpush1.bf16.msra.mxu0 0
    %1203 = vmatprep.subr.bf16.mxu0 0
    %1204 = vmatpush1.bf16.msra.mxu0 0
    %1205 = vmatprep.subr.bf16.mxu0 0
    %1206 = vmatpush1.bf16.msra.mxu0 0
    %1207 = vmatprep.subr.bf16.mxu0 0
    %1208 = vmatpush1.bf16.msra.mxu0 0
    %1209 = vmatprep.subr.bf16.mxu0 0
    %1210 = vmatpush1.bf16.msra.mxu0 0
    %1211 = vmatprep.subr.bf16.mxu0 0
    %1212 = vmatpush1.bf16.msra.mxu0 0
    %1213 = vmatprep.mubr.bf16.mxu0 0
    %1214 = vmatmul.mubr.bf16.gmra.mrb[0].mxu0 %v1139
    %v1215 = vpop.f32.mrb[0].mxu0
    %v1216 = vadd.f32 0.0, %v1215
    %v1217 = vpop.f32.mrb[0].mxu0
    %v1218 = vadd.f32 0.0, %v1217
    %v1219 = vpop.f32.mrb[0].mxu0
    %v1220 = vpop.f32.mrb[0].mxu0
    %1221 = vdwg.mxu0
    %v1222 = vadd.f32 %v1135, %v1175
    %v1223 = vadd.f32 %v1136, %v1177
    %v1224 = vadd.f32 %v1137, %v1216
    %v1225 = vadd.f32 %v1138, %v1218
    %v1226 = vxor.u32 %v1222, 2147483648
    %v1227 = vmul.f32 %v1226, 1.442695
    %v1228 = vpow.pop %v1227
    %v1229 = vadd.f32 %v1228, 1.0
    %v1230 = vrcp.pop %v1229
    %v1231 = vmul.f32 1.0, %v1230
    %v1232 = vxor.u32 %v1223, 2147483648
    %v1233 = vmul.f32 %v1232, 1.442695
    %v1234 = vpow.pop %v1233
    %v1235 = vadd.f32 %v1234, 1.0
    %v1236 = vrcp.pop %v1235
    %v1237 = vmul.f32 1.0, %v1236
    %v1238 = vtanh.pop %v1224
    %v1239 = vxor.u32 %v1225, 2147483648
    %v1240 = vmul.f32 %v1239, 1.442695
    %v1241 = vpow.pop %v1240
    %v1242 = vadd.f32 %v1241, 1.0
    %v1243 = vrcp.pop %v1242
    %v1244 = vmul.f32 1.0, %v1243
    %v1245 = vmul.f32 %v1237, %v1132
    %v1246 = vmul.f32 %v1231, %v1238
    %v1247 = vadd.f32 %v1245, %v1246
    %v1248 = vtanh.pop %v1247
    %v1249 = vmul.f32 %v1244, %v1248
    %v1250 = vld [vmem:[#allocation2 + $0xa0] sm:$0xff]
    %v1251 = vld [vmem:[#allocation2 + $0xa8] sm:$0xff]
    %v1252 = vld [vmem:[#allocation2 + $0xb0] sm:$0xff]
    %v1253 = vld [vmem:[#allocation2 + $0xb8] sm:$0xff]
    %v1254 = vpack.c.bf16 %v1249, %v1249
    %1255 = vmatprep.subr.bf16.mxu0 %v617
    %1256 = vmatpush1.bf16.msra.mxu0 %v616
    %1257 = vmatprep.subr.bf16.mxu0 %v621
    %1258 = vmatpush1.bf16.msra.mxu0 %v620
    %1259 = vmatprep.subr.bf16.mxu0 %v625
    %1260 = vmatpush1.bf16.msra.mxu0 %v624
    %1261 = vmatprep.subr.bf16.mxu0 %v629
    %1262 = vmatpush1.bf16.msra.mxu0 %v628
    %1263 = vmatprep.subr.bf16.mxu0 %v633
    %1264 = vmatpush1.bf16.msra.mxu0 %v632
    %1265 = vmatprep.subr.bf16.mxu0 %v637
    %1266 = vmatpush1.bf16.msra.mxu0 %v636
    %1267 = vmatprep.subr.bf16.mxu0 %v641
    %1268 = vmatpush1.bf16.msra.mxu0 %v640
    %1269 = vmatprep.subr.bf16.mxu0 %v645
    %1270 = vmatpush1.bf16.msra.mxu0 %v644
    %1271 = vmatprep.subr.bf16.mxu0 0
    %1272 = vmatpush1.bf16.msra.mxu0 0
    %1273 = vmatprep.subr.bf16.mxu0 0
    %1274 = vmatpush1.bf16.msra.mxu0 0
    %1275 = vmatprep.subr.bf16.mxu0 0
    %1276 = vmatpush1.bf16.msra.mxu0 0
    %1277 = vmatprep.subr.bf16.mxu0 0
    %1278 = vmatpush1.bf16.msra.mxu0 0
    %1279 = vmatprep.subr.bf16.mxu0 0
    %1280 = vmatpush1.bf16.msra.mxu0 0
    %1281 = vmatprep.subr.bf16.mxu0 0
    %1282 = vmatpush1.bf16.msra.mxu0 0
    %1283 = vmatprep.subr.bf16.mxu0 0
    %1284 = vmatpush1.bf16.msra.mxu0 0
    %1285 = vmatprep.subr.bf16.mxu0 0
    %1286 = vmatpush1.bf16.msra.mxu0 0
    %1287 = vmatprep.mubr.bf16.mxu0 0
    %1288 = vmatmul.mubr.bf16.gmra.mrb[0].mxu0 %v1254
    %v1289 = vpop.f32.mrb[0].mxu0
    %v1290 = vadd.f32 0.0, %v1289
    %v1291 = vpop.f32.mrb[0].mxu0
    %v1292 = vadd.f32 0.0, %v1291
    %v1293 = vpop.f32.mrb[0].mxu0
    %v1294 = vpop.f32.mrb[0].mxu0
    %1295 = vdwg.mxu0
    %1296 = vmatprep.subr.bf16.mxu0 %v619
    %1297 = vmatpush1.bf16.msra.mxu0 %v618
    %1298 = vmatprep.subr.bf16.mxu0 %v623
    %1299 = vmatpush1.bf16.msra.mxu0 %v622
    %1300 = vmatprep.subr.bf16.mxu0 %v627
    %1301 = vmatpush1.bf16.msra.mxu0 %v626
    %1302 = vmatprep.subr.bf16.mxu0 %v631
    %1303 = vmatpush1.bf16.msra.mxu0 %v630
    %1304 = vmatprep.subr.bf16.mxu0 %v635
    %1305 = vmatpush1.bf16.msra.mxu0 %v634
    %1306 = vmatprep.subr.bf16.mxu0 %v639
    %1307 = vmatpush1.bf16.msra.mxu0 %v638
    %1308 = vmatprep.subr.bf16.mxu0 %v643
    %1309 = vmatpush1.bf16.msra.mxu0 %v642
    %1310 = vmatprep.subr.bf16.mxu0 %v647
    %1311 = vmatpush1.bf16.msra.mxu0 %v646
    %1312 = vmatprep.subr.bf16.mxu0 0
    %1313 = vmatpush1.bf16.msra.mxu0 0
    %1314 = vmatprep.subr.bf16.mxu0 0
    %1315 = vmatpush1.bf16.msra.mxu0 0
    %1316 = vmatprep.subr.bf16.mxu0 0
    %1317 = vmatpush1.bf16.msra.mxu0 0
    %1318 = vmatprep.subr.bf16.mxu0 0
    %1319 = vmatpush1.bf16.msra.mxu0 0
    %1320 = vmatprep.subr.bf16.mxu0 0
    %1321 = vmatpush1.bf16.msra.mxu0 0
    %1322 = vmatprep.subr.bf16.mxu0 0
    %1323 = vmatpush1.bf16.msra.mxu0 0
    %1324 = vmatprep.subr.bf16.mxu0 0
    %1325 = vmatpush1.bf16.msra.mxu0 0
    %1326 = vmatprep.subr.bf16.mxu0 0
    %1327 = vmatpush1.bf16.msra.mxu0 0
    %1328 = vmatprep.mubr.bf16.mxu0 0
    %1329 = vmatmul.mubr.bf16.gmra.mrb[0].mxu0 %v1254
    %v1330 = vpop.f32.mrb[0].mxu0
    %v1331 = vadd.f32 0.0, %v1330
    %v1332 = vpop.f32.mrb[0].mxu0
    %v1333 = vadd.f32 0.0, %v1332
    %v1334 = vpop.f32.mrb[0].mxu0
    %v1335 = vpop.f32.mrb[0].mxu0
    %1336 = vdwg.mxu0
    %v1337 = vadd.f32 %v1250, %v1290
    %v1338 = vadd.f32 %v1251, %v1292
    %v1339 = vadd.f32 %v1252, %v1331
    %v1340 = vadd.f32 %v1253, %v1333
    %v1341 = vxor.u32 %v1337, 2147483648
    %v1342 = vmul.f32 %v1341, 1.442695
    %v1343 = vpow.pop %v1342
    %v1344 = vadd.f32 %v1343, 1.0
    %v1345 = vrcp.pop %v1344
    %v1346 = vmul.f32 1.0, %v1345
    %v1347 = vxor.u32 %v1338, 2147483648
    %v1348 = vmul.f32 %v1347, 1.442695
    %v1349 = vpow.pop %v1348
    %v1350 = vadd.f32 %v1349, 1.0
    %v1351 = vrcp.pop %v1350
    %v1352 = vmul.f32 1.0, %v1351
    %v1353 = vtanh.pop %v1339
    %v1354 = vxor.u32 %v1340, 2147483648
    %v1355 = vmul.f32 %v1354, 1.442695
    %v1356 = vpow.pop %v1355
    %v1357 = vadd.f32 %v1356, 1.0
    %v1358 = vrcp.pop %v1357
    %v1359 = vmul.f32 1.0, %v1358
    %v1360 = vmul.f32 %v1352, %v1247
    %v1361 = vmul.f32 %v1346, %v1353
    %v1362 = vadd.f32 %v1360, %v1361
    %v1363 = vtanh.pop %v1362
    %v1364 = vmul.f32 %v1359, %v1363
    %v1365 = vld [vmem:[#allocation2 + $0xc0] sm:$0xff]
    %v1366 = vld [vmem:[#allocation2 + $0xc8] sm:$0xff]
    %v1367 = vld [vmem:[#allocation2 + $0xd0] sm:$0xff]
    %v1368 = vld [vmem:[#allocation2 + $0xd8] sm:$0xff]
    %v1369 = vpack.c.bf16 %v1364, %v1364
    %1370 = vmatprep.subr.bf16.mxu0 %v617
    %1371 = vmatpush1.bf16.msra.mxu0 %v616
    %1372 = vmatprep.subr.bf16.mxu0 %v621
    %1373 = vmatpush1.bf16.msra.mxu0 %v620
    %1374 = vmatprep.subr.bf16.mxu0 %v625
    %1375 = vmatpush1.bf16.msra.mxu0 %v624
    %1376 = vmatprep.subr.bf16.mxu0 %v629
    %1377 = vmatpush1.bf16.msra.mxu0 %v628
    %1378 = vmatprep.subr.bf16.mxu0 %v633
    %1379 = vmatpush1.bf16.msra.mxu0 %v632
    %1380 = vmatprep.subr.bf16.mxu0 %v637
    %1381 = vmatpush1.bf16.msra.mxu0 %v636
    %1382 = vmatprep.subr.bf16.mxu0 %v641
    %1383 = vmatpush1.bf16.msra.mxu0 %v640
    %1384 = vmatprep.subr.bf16.mxu0 %v645
    %1385 = vmatpush1.bf16.msra.mxu0 %v644
    %1386 = vmatprep.subr.bf16.mxu0 0
    %1387 = vmatpush1.bf16.msra.mxu0 0
    %1388 = vmatprep.subr.bf16.mxu0 0
    %1389 = vmatpush1.bf16.msra.mxu0 0
    %1390 = vmatprep.subr.bf16.mxu0 0
    %1391 = vmatpush1.bf16.msra.mxu0 0
    %1392 = vmatprep.subr.bf16.mxu0 0
    %1393 = vmatpush1.bf16.msra.mxu0 0
    %1394 = vmatprep.subr.bf16.mxu0 0
    %1395 = vmatpush1.bf16.msra.mxu0 0
    %1396 = vmatprep.subr.bf16.mxu0 0
    %1397 = vmatpush1.bf16.msra.mxu0 0
    %1398 = vmatprep.subr.bf16.mxu0 0
    %1399 = vmatpush1.bf16.msra.mxu0 0
    %1400 = vmatprep.subr.bf16.mxu0 0
    %1401 = vmatpush1.bf16.msra.mxu0 0
    %1402 = vmatprep.mubr.bf16.mxu0 0
    %1403 = vmatmul.mubr.bf16.gmra.mrb[0].mxu0 %v1369
    %v1404 = vpop.f32.mrb[0].mxu0
    %v1405 = vadd.f32 0.0, %v1404
    %v1406 = vpop.f32.mrb[0].mxu0
    %v1407 = vadd.f32 0.0, %v1406
    %v1408 = vpop.f32.mrb[0].mxu0
    %v1409 = vpop.f32.mrb[0].mxu0
    %1410 = vdwg.mxu0
    %1411 = vmatprep.subr.bf16.mxu0 %v619
    %1412 = vmatpush1.bf16.msra.mxu0 %v618
    %1413 = vmatprep.subr.bf16.mxu0 %v623
    %1414 = vmatpush1.bf16.msra.mxu0 %v622
    %1415 = vmatprep.subr.bf16.mxu0 %v627
    %1416 = vmatpush1.bf16.msra.mxu0 %v626
    %1417 = vmatprep.subr.bf16.mxu0 %v631
    %1418 = vmatpush1.bf16.msra.mxu0 %v630
    %1419 = vmatprep.subr.bf16.mxu0 %v635
    %1420 = vmatpush1.bf16.msra.mxu0 %v634
    %1421 = vmatprep.subr.bf16.mxu0 %v639
    %1422 = vmatpush1.bf16.msra.mxu0 %v638
    %1423 = vmatprep.subr.bf16.mxu0 %v643
    %1424 = vmatpush1.bf16.msra.mxu0 %v642
    %1425 = vmatprep.subr.bf16.mxu0 %v647
    %1426 = vmatpush1.bf16.msra.mxu0 %v646
    %1427 = vmatprep.subr.bf16.mxu0 0
    %1428 = vmatpush1.bf16.msra.mxu0 0
    %1429 = vmatprep.subr.bf16.mxu0 0
    %1430 = vmatpush1.bf16.msra.mxu0 0
    %1431 = vmatprep.subr.bf16.mxu0 0
    %1432 = vmatpush1.bf16.msra.mxu0 0
    %1433 = vmatprep.subr.bf16.mxu0 0
    %1434 = vmatpush1.bf16.msra.mxu0 0
    %1435 = vmatprep.subr.bf16.mxu0 0
    %1436 = vmatpush1.bf16.msra.mxu0 0
    %1437 = vmatprep.subr.bf16.mxu0 0
    %1438 = vmatpush1.bf16.msra.mxu0 0
    %1439 = vmatprep.subr.bf16.mxu0 0
    %1440 = vmatpush1.bf16.msra.mxu0 0
    %1441 = vmatprep.subr.bf16.mxu0 0
    %1442 = vmatpush1.bf16.msra.mxu0 0
    %1443 = vmatprep.mubr.bf16.mxu0 0
    %1444 = vmatmul.mubr.bf16.gmra.mrb[0].mxu0 %v1369
    %v1445 = vpop.f32.mrb[0].mxu0
    %v1446 = vadd.f32 0.0, %v1445
    %v1447 = vpop.f32.mrb[0].mxu0
    %v1448 = vadd.f32 0.0, %v1447
    %v1449 = vpop.f32.mrb[0].mxu0
    %v1450 = vpop.f32.mrb[0].mxu0
    %1451 = vdwg.mxu0
    %v1452 = vadd.f32 %v1365, %v1405
    %v1453 = vadd.f32 %v1366, %v1407
    %v1454 = vadd.f32 %v1367, %v1446
    %v1455 = vadd.f32 %v1368, %v1448
    %v1456 = vxor.u32 %v1452, 2147483648
    %v1457 = vmul.f32 %v1456, 1.442695
    %v1458 = vpow.pop %v1457
    %v1459 = vadd.f32 %v1458, 1.0
    %v1460 = vrcp.pop %v1459
    %v1461 = vmul.f32 1.0, %v1460
    %v1462 = vxor.u32 %v1453, 2147483648
    %v1463 = vmul.f32 %v1462, 1.442695
    %v1464 = vpow.pop %v1463
    %v1465 = vadd.f32 %v1464, 1.0
    %v1466 = vrcp.pop %v1465
    %v1467 = vmul.f32 1.0, %v1466
    %v1468 = vtanh.pop %v1454
    %v1469 = vxor.u32 %v1455, 2147483648
    %v1470 = vmul.f32 %v1469, 1.442695
    %v1471 = vpow.pop %v1470
    %v1472 = vadd.f32 %v1471, 1.0
    %v1473 = vrcp.pop %v1472
    %v1474 = vmul.f32 1.0, %v1473
    %v1475 = vmul.f32 %v1467, %v1362
    %v1476 = vmul.f32 %v1461, %v1468
    %v1477 = vadd.f32 %v1475, %v1476
    %v1478 = vtanh.pop %v1477
    %v1479 = vmul.f32 %v1474, %v1478
    %v1480 = vld [vmem:[#allocation2 + $0xe0] sm:$0xff]
    %v1481 = vld [vmem:[#allocation2 + $0xe8] sm:$0xff]
    %v1482 = vld [vmem:[#allocation2 + $0xf0] sm:$0xff]
    %v1483 = vld [vmem:[#allocation2 + $0xf8] sm:$0xff]
    %v1484 = vpack.c.bf16 %v1479, %v1479
    %1485 = vmatprep.subr.bf16.mxu0 %v617
    %1486 = vmatpush1.bf16.msra.mxu0 %v616
    %1487 = vmatprep.subr.bf16.mxu0 %v621
    %1488 = vmatpush1.bf16.msra.mxu0 %v620
    %1489 = vmatprep.subr.bf16.mxu0 %v625
    %1490 = vmatpush1.bf16.msra.mxu0 %v624
    %1491 = vmatprep.subr.bf16.mxu0 %v629
    %1492 = vmatpush1.bf16.msra.mxu0 %v628
    %1493 = vmatprep.subr.bf16.mxu0 %v633
    %1494 = vmatpush1.bf16.msra.mxu0 %v632
    %1495 = vmatprep.subr.bf16.mxu0 %v637
    %1496 = vmatpush1.bf16.msra.mxu0 %v636
    %1497 = vmatprep.subr.bf16.mxu0 %v641
    %1498 = vmatpush1.bf16.msra.mxu0 %v640
    %1499 = vmatprep.subr.bf16.mxu0 %v645
    %1500 = vmatpush1.bf16.msra.mxu0 %v644
    %1501 = vmatprep.subr.bf16.mxu0 0
    %1502 = vmatpush1.bf16.msra.mxu0 0
    %1503 = vmatprep.subr.bf16.mxu0 0
    %1504 = vmatpush1.bf16.msra.mxu0 0
    %1505 = vmatprep.subr.bf16.mxu0 0
    %1506 = vmatpush1.bf16.msra.mxu0 0
    %1507 = vmatprep.subr.bf16.mxu0 0
    %1508 = vmatpush1.bf16.msra.mxu0 0
    %1509 = vmatprep.subr.bf16.mxu0 0
    %1510 = vmatpush1.bf16.msra.mxu0 0
    %1511 = vmatprep.subr.bf16.mxu0 0
    %1512 = vmatpush1.bf16.msra.mxu0 0
    %1513 = vmatprep.subr.bf16.mxu0 0
    %1514 = vmatpush1.bf16.msra.mxu0 0
    %1515 = vmatprep.subr.bf16.mxu0 0
    %1516 = vmatpush1.bf16.msra.mxu0 0
    %1517 = vmatprep.mubr.bf16.mxu0 0
    %1518 = vmatmul.mubr.bf16.gmra.mrb[0].mxu0 %v1484
    %v1519 = vpop.f32.mrb[0].mxu0
    %v1520 = vadd.f32 0.0, %v1519
    %v1521 = vpop.f32.mrb[0].mxu0
    %v1522 = vadd.f32 0.0, %v1521
    %v1523 = vpop.f32.mrb[0].mxu0
    %v1524 = vpop.f32.mrb[0].mxu0
    %1525 = vdwg.mxu0
    %1526 = vmatprep.subr.bf16.mxu0 %v619
    %1527 = vmatpush1.bf16.msra.mxu0 %v618
    %1528 = vmatprep.subr.bf16.mxu0 %v623
    %1529 = vmatpush1.bf16.msra.mxu0 %v622
    %1530 = vmatprep.subr.bf16.mxu0 %v627
    %1531 = vmatpush1.bf16.msra.mxu0 %v626
    %1532 = vmatprep.subr.bf16.mxu0 %v631
    %1533 = vmatpush1.bf16.msra.mxu0 %v630
    %1534 = vmatprep.subr.bf16.mxu0 %v635
    %1535 = vmatpush1.bf16.msra.mxu0 %v634
    %1536 = vmatprep.subr.bf16.mxu0 %v639
    %1537 = vmatpush1.bf16.msra.mxu0 %v638
    %1538 = vmatprep.subr.bf16.mxu0 %v643
    %1539 = vmatpush1.bf16.msra.mxu0 %v642
    %1540 = vmatprep.subr.bf16.mxu0 %v647
    %1541 = vmatpush1.bf16.msra.mxu0 %v646
    %1542 = vmatprep.subr.bf16.mxu0 0
    %1543 = vmatpush1.bf16.msra.mxu0 0
    %1544 = vmatprep.subr.bf16.mxu0 0
    %1545 = vmatpush1.bf16.msra.mxu0 0
    %1546 = vmatprep.subr.bf16.mxu0 0
    %1547 = vmatpush1.bf16.msra.mxu0 0
    %1548 = vmatprep.subr.bf16.mxu0 0
    %1549 = vmatpush1.bf16.msra.mxu0 0
    %1550 = vmatprep.subr.bf16.mxu0 0
    %1551 = vmatpush1.bf16.msra.mxu0 0
    %1552 = vmatprep.subr.bf16.mxu0 0
    %1553 = vmatpush1.bf16.msra.mxu0 0
    %1554 = vmatprep.subr.bf16.mxu0 0
    %1555 = vmatpush1.bf16.msra.mxu0 0
    %1556 = vmatprep.subr.bf16.mxu0 0
    %1557 = vmatpush1.bf16.msra.mxu0 0
    %1558 = vmatprep.mubr.bf16.mxu0 0
    %1559 = vmatmul.mubr.bf16.gmra.mrb[0].mxu0 %v1484
    %v1560 = vpop.f32.mrb[0].mxu0
    %v1561 = vadd.f32 0.0, %v1560
    %v1562 = vpop.f32.mrb[0].mxu0
    %v1563 = vadd.f32 0.0, %v1562
    %v1564 = vpop.f32.mrb[0].mxu0
    %v1565 = vpop.f32.mrb[0].mxu0
    %1566 = vdwg.mxu0
    %v1567 = vadd.f32 %v1480, %v1520
    %v1568 = vadd.f32 %v1481, %v1522
    %v1569 = vadd.f32 %v1482, %v1561
    %v1570 = vadd.f32 %v1483, %v1563
    %v1571 = vxor.u32 %v1567, 2147483648
    %v1572 = vmul.f32 %v1571, 1.442695
    %v1573 = vpow.pop %v1572
    %v1574 = vadd.f32 %v1573, 1.0
    %v1575 = vrcp.pop %v1574
    %v1576 = vmul.f32 1.0, %v1575
    %v1577 = vxor.u32 %v1568, 2147483648
    %v1578 = vmul.f32 %v1577, 1.442695
    %v1579 = vpow.pop %v1578
    %v1580 = vadd.f32 %v1579, 1.0
    %v1581 = vrcp.pop %v1580
    %v1582 = vmul.f32 1.0, %v1581
    %v1583 = vtanh.pop %v1569
    %v1584 = vxor.u32 %v1570, 2147483648
    %v1585 = vmul.f32 %v1584, 1.442695
    %v1586 = vpow.pop %v1585
    %v1587 = vadd.f32 %v1586, 1.0
    %v1588 = vrcp.pop %v1587
    %v1589 = vmul.f32 1.0, %v1588
    %v1590 = vmul.f32 %v1582, %v1477
    %v1591 = vmul.f32 %v1576, %v1583
    %v1592 = vadd.f32 %v1590, %v1591
    %v1593 = vtanh.pop %v1592
    %v1594 = vmul.f32 %v1589, %v1593
    %1595 = vst [vmem:[#allocation9] sm:$0xff] %v1594
    // Predicated region
    $region30: #{tpu_custom_call.1} parent=1 // pred_check
      _
    $region31: #{tpu_custom_call.1} parent=1 // pred_check_branch
      %1597 = sbr.rel (0) target = $region33
    $region32: #{tpu_custom_call.1} parent=1 // pred_region
      %s1599 = ssub.s32 128, 128
      %1600 = vsyncadd [#allocation5], %s1599
      %s1602 = sshll.u32 [#allocation9], 4
      %s1603 = int_to_ptr.vmem [resolvable:$true] %s1602
      %1605 = dma.vmem_to_hbm [thread:$0]  %s1603, 128, %s4, [#allocation5]
    $region33: #{tpu_custom_call.1} parent=1 // pred_fallthru
      _
    // Predicated region
    $region34: #{tpu_custom_call.1} parent=1 // pred_check
      _
    $region35: #{tpu_custom_call.1} parent=1 // pred_check_branch
      %1607 = sbr.rel (0) target = $region37
    $region36: #{tpu_custom_call.1} parent=1 // pred_region
      %1608 = dma.done [#allocation5], 128
    $region37: #{tpu_custom_call.1} parent=1 // pred_fallthru
      _
    %1609 = vsyncpa [#allocation4], 1
    %1610 = vsyncpa [#allocation7], 1
    %1611 = vsyncpa [#allocation5], 1

</llo_original>
